<compile_context>
chip_gen: v7x
topology: tpu7x:2x2x1
jax: 0.10.0
libtpu: 0.0.40
codegen_flags: <defaults>
</compile_context>

<pallas_src>
import jax
import jax.numpy as jnp
from jax.experimental import pallas as pl
from jax.experimental.pallas import tpu as pltpu


def _leaky_relu(x, slope=0.01):
    return jnp.where(x > 0, x, slope * x)


def vnet_lstm_kernel(
    x_ref,            # (S*B, F)   all timesteps, flattened over time x batch
    w1_ref,           # (F, H)     shared_net Linear weight (pre-transposed)
    b1_ref,           # (1, H)     shared_net bias
    wih_ref,          # (H, 4H)    LSTM W_ih (pre-transposed)
    whh_ref,          # (H, 4H)    LSTM W_hh (pre-transposed)
    bg_ref,           # (1, 4H)    b_ih + b_hh (pre-summed)
    wv_ref,           # (1, H)     value head weight
    bv_ref,           # (1, 1)     value head bias
    value_ref,        # (S, B)     output values (lane-dense; reshaped outside)
    hout_ref,         # (S, 2, B, H) (h, c) snapshots before each update
    hseq_scr,         # VMEM scratch (S, B, H): h after each update
):
    S, B, H = hseq_scr.shape

    # ---------- prologue: time-invariant work hoisted off the recurrence ----
    # shared_net for all timesteps in one (S*B, F) x (F, H) matmul.
    shared = _leaky_relu(
        jnp.dot(x_ref[...], w1_ref[...], preferred_element_type=jnp.float32)
        + b1_ref[...]
    )                                                           # (S*B, H)
    # Input-to-gate contribution (plus both biases) for all timesteps at once.
    gx = (
        jnp.dot(shared, wih_ref[...], preferred_element_type=jnp.float32)
        + bg_ref[...]
    )                                                           # (S*B, 4H)

    whh = whh_ref[...]                                          # (H, 4H)

    # ---------- recurrence: fully unrolled (S is small and static) ----------
    h = jnp.zeros((B, H), jnp.float32)
    c = jnp.zeros((B, H), jnp.float32)
    for t in range(S):
        # hidden_outputs[t] = cat(hidden, cell) *before* the LSTM update.
        hout_ref[t, 0, :, :] = h
        hout_ref[t, 1, :, :] = c

        # Only the h-dependent matmul is on the serial path (PyTorch gate
        # ordering i, f, g, o).
        gates = gx[t * B:(t + 1) * B, :] + jnp.dot(
            h, whh, preferred_element_type=jnp.float32)         # (B, 4H)

        sg = jax.nn.sigmoid(gates)   # full 128-lane vreg transcendentals
        tg = jnp.tanh(gates)
        i_g = sg[:, 0 * H:1 * H]
        f_g = sg[:, 1 * H:2 * H]
        g_g = tg[:, 2 * H:3 * H]
        o_g = sg[:, 3 * H:4 * H]

        c = f_g * c + i_g * g_g
        h = o_g * jnp.tanh(c)
        hseq_scr[t] = h

    # ---------- epilogue: value head over the whole h sequence at once ------
    h_all = _leaky_relu(hseq_scr[...])                          # (S, B, H)
    value_ref[...] = jnp.sum(h_all * wv_ref[...], axis=-1) + bv_ref[...]


def value_network_lstm_forward(x, params):
    """x: (seq, batch, in_features) float32. Returns (value, hidden_outputs)."""
    S, B, F = x.shape
    H = params["w1"].shape[0]

    # Pre-transpose / pre-fuse parameters so the kernel never transposes.
    w1t = jnp.transpose(params["w1"])        # (F, H)
    wih_t = jnp.transpose(params["wih"])     # (H, 4H)
    whh_t = jnp.transpose(params["whh"])     # (H, 4H)
    bg = params["bih"] + params["bhh"]       # (1, 4H)

    x2 = x.reshape(S * B, F)                 # flatten time x batch (XLA-side)

    vmem = lambda: pl.BlockSpec(memory_space=pltpu.MemorySpace.VMEM)

    value2d, hidden_outputs = pl.pallas_call(
        vnet_lstm_kernel,
        out_shape=(
            jax.ShapeDtypeStruct((S, B), jnp.float32),
            jax.ShapeDtypeStruct((S, 2, B, H), jnp.float32),
        ),
        in_specs=[vmem() for _ in range(8)],
        out_specs=(vmem(), vmem()),
        scratch_shapes=[pltpu.VMEM((S, B, H), jnp.float32)],
    )(x2, w1t, params["b1"], wih_t, whh_t, bg, params["wv"], params["bv"])

    # Match the PyTorch output shape (seq, batch, 1).
    return value2d[..., None], hidden_outputs


value_network_lstm_forward_jit = jax.jit(value_network_lstm_forward)


def init_params(key, in_features, hidden_size):
    """Deterministic synthetic parameters matching PyTorch layer shapes."""
    ks = jax.random.split(key, 9)
    u = lambda k, shape, scale: jax.random.uniform(
        k, shape, jnp.float32, minval=-scale, maxval=scale)
    s1 = 1.0 / jnp.sqrt(in_features)
    sh = 1.0 / jnp.sqrt(hidden_size)
    return {
        # shared_net Linear(in_features, hidden)
        "w1": u(ks[0], (hidden_size, in_features), s1),
        "b1": u(ks[1], (1, hidden_size), s1),
        # LSTM weight_ih_l0 / weight_hh_l0 / biases (gate order i,f,g,o)
        "wih": u(ks[2], (4 * hidden_size, hidden_size), sh),
        "whh": u(ks[3], (4 * hidden_size, hidden_size), sh),
        "bih": u(ks[4], (1, 4 * hidden_size), sh),
        "bhh": u(ks[5], (1, 4 * hidden_size), sh),
        # value_net Linear(hidden, 1)
        "wv": u(ks[6], (1, hidden_size), sh),
        "bv": u(ks[7], (1, 1), sh),
    }


def reference_forward(x, params):
    """Pure-JAX reference of the PyTorch forward (for a sanity check)."""
    S, B, F = x.shape
    H = params["w1"].shape[0]
    shared = _leaky_relu(x @ params["w1"].T + params["b1"])
    h = jnp.zeros((B, H), jnp.float32)
    c = jnp.zeros((B, H), jnp.float32)
    values, houts = [], []
    for t in range(S):
        houts.append(jnp.stack([h, c], axis=0))
        gates = shared[t] @ params["wih"].T + h @ params["whh"].T \
            + params["bih"] + params["bhh"]
        i_g = jax.nn.sigmoid(gates[:, 0 * H:1 * H])
        f_g = jax.nn.sigmoid(gates[:, 1 * H:2 * H])
        g_g = jnp.tanh(gates[:, 2 * H:3 * H])
        o_g = jax.nn.sigmoid(gates[:, 3 * H:4 * H])
        c = f_g * c + i_g * g_g
        h = o_g * jnp.tanh(c)
        values.append(_leaky_relu(h) @ params["wv"].T + params["bv"])
    return jnp.stack(values, axis=0), jnp.stack(houts, axis=0)


if __name__ == "__main__":
    # Small shapes: seq=8, batch=2, in_features=16, hidden=32
    SEQ, BATCH, IN_FEATURES, HIDDEN = 8, 2, 16, 32

    key = jax.random.PRNGKey(0)
    kx, kp = jax.random.split(key)
    x = jax.random.normal(kx, (SEQ, BATCH, IN_FEATURES), dtype=jnp.float32)
    params = init_params(kp, IN_FEATURES, HIDDEN)

    value, hidden_outputs = value_network_lstm_forward_jit(x, params)
    value = jax.block_until_ready(value)
    hidden_outputs = jax.block_until_ready(hidden_outputs)

    # sanity check vs pure-JAX reference
    v_ref, h_ref = reference_forward(x, params)
    assert value.shape == (SEQ, BATCH, 1)
    assert hidden_outputs.shape == (SEQ, 2, BATCH, HIDDEN)
    assert jnp.allclose(value, v_ref, atol=1e-4, rtol=1e-4)
    assert jnp.allclose(hidden_outputs, h_ref, atol=1e-4, rtol=1e-4)

    # TODO(synk): `dones` masking / external `input_hidden` injection are
    # stateful module features; only the default (None) forward path is
    # implemented here.  bf16 weight casting (v6e/v7x) and a parallel batch
    # grid axis (v7x second TensorCore) are left out at this tiny batch size.
    print("KERNEL_OK")
</pallas_src>

<mosaic_0001>
module attributes {stable_mosaic.version = 11 : i64} {
  func.func @vnet_lstm_kernel(%arg0: memref<16x16xf32, #tpu.memory_space<vmem>>, %arg1: memref<16x32xf32, #tpu.memory_space<vmem>>, %arg2: memref<1x32xf32, #tpu.memory_space<vmem>>, %arg3: memref<32x128xf32, #tpu.memory_space<vmem>>, %arg4: memref<32x128xf32, #tpu.memory_space<vmem>>, %arg5: memref<1x128xf32, #tpu.memory_space<vmem>>, %arg6: memref<1x32xf32, #tpu.memory_space<vmem>>, %arg7: memref<1x1xf32, #tpu.memory_space<vmem>>, %arg8: memref<8x2xf32, #tpu.memory_space<vmem>>, %arg9: memref<8x2x2x32xf32, #tpu.memory_space<vmem>>, %arg10: memref<8x2x32xf32, #tpu.memory_space<vmem>>) attributes {dimension_semantics = [], scalar_prefetch = 0 : i64, scratch_operands = 1 : i64, tpu.core_type = #tpu.core_type<tc>} {
    %c0 = arith.constant 0 : index
    %c0_0 = arith.constant 0 : index
    %0 = vector.load %arg0[%c0, %c0_0] : memref<16x16xf32, #tpu.memory_space<vmem>>, vector<16x16xf32>
    %c0_1 = arith.constant 0 : index
    %c0_2 = arith.constant 0 : index
    %1 = vector.load %arg1[%c0_1, %c0_2] : memref<16x32xf32, #tpu.memory_space<vmem>>, vector<16x32xf32>
    %cst = arith.constant dense<0.000000e+00> : vector<16x32xf32>
    %2 = tpu.matmul %0, %1, %cst {dimension_numbers = #tpu.dot_dimension_numbers<[1], [0], [0], [1], [0, 0, 1, 1], [], []>} : vector<16x16xf32>, vector<16x32xf32>, vector<16x32xf32> -> vector<16x32xf32>
    %c0_3 = arith.constant 0 : index
    %c0_4 = arith.constant 0 : index
    %3 = vector.load %arg2[%c0_3, %c0_4] : memref<1x32xf32, #tpu.memory_space<vmem>>, vector<1x32xf32>
    %4 = vector.broadcast %3 : vector<1x32xf32> to vector<16x32xf32>
    %5 = arith.addf %2, %4 : vector<16x32xf32>
    %cst_5 = arith.constant 0.000000e+00 : f32
    %6 = vector.broadcast %cst_5 : f32 to vector<16x32xf32>
    %7 = arith.cmpf ogt, %5, %6 : vector<16x32xf32>
    %cst_6 = arith.constant 0.00999999977 : f32
    %8 = vector.broadcast %cst_6 : f32 to vector<16x32xf32>
    %9 = arith.mulf %8, %5 : vector<16x32xf32>
    %10 = arith.select %7, %5, %9 : vector<16x32xi1>, vector<16x32xf32>
    %c0_7 = arith.constant 0 : index
    %c0_8 = arith.constant 0 : index
    %11 = vector.load %arg3[%c0_7, %c0_8] : memref<32x128xf32, #tpu.memory_space<vmem>>, vector<32x128xf32>
    %cst_9 = arith.constant dense<0.000000e+00> : vector<16x128xf32>
    %12 = tpu.matmul %10, %11, %cst_9 {dimension_numbers = #tpu.dot_dimension_numbers<[1], [0], [0], [1], [0, 0, 1, 1], [], []>} : vector<16x32xf32>, vector<32x128xf32>, vector<16x128xf32> -> vector<16x128xf32>
    %c0_10 = arith.constant 0 : index
    %c0_11 = arith.constant 0 : index
    %13 = vector.load %arg5[%c0_10, %c0_11] : memref<1x128xf32, #tpu.memory_space<vmem>>, vector<1x128xf32>
    %14 = vector.broadcast %13 : vector<1x128xf32> to vector<16x128xf32>
    %15 = arith.addf %12, %14 : vector<16x128xf32>
    %c0_12 = arith.constant 0 : index
    %c0_13 = arith.constant 0 : index
    %16 = vector.load %arg4[%c0_12, %c0_13] : memref<32x128xf32, #tpu.memory_space<vmem>>, vector<32x128xf32>
    %cst_14 = arith.constant 0.000000e+00 : f32
    %17 = vector.broadcast %cst_14 : f32 to vector<2x32xf32>
    %cst_15 = arith.constant 0.000000e+00 : f32
    %18 = vector.broadcast %cst_15 : f32 to vector<2x32xf32>
    %c0_16 = arith.constant 0 : index
    %c0_17 = arith.constant 0 : index
    %c0_18 = arith.constant 0 : index
    %c0_19 = arith.constant 0 : index
    %19 = vector.load %arg9[%c0_16, %c0_17, %c0_18, %c0_19] : memref<8x2x2x32xf32, #tpu.memory_space<vmem>>, vector<1x1x2x32xf32>
    %20 = vector.shape_cast %19 : vector<1x1x2x32xf32> to vector<2x32xf32>
    %21 = vector.shape_cast %17 : vector<2x32xf32> to vector<1x1x2x32xf32>
    tpu.vector_store %arg9[%c0_16, %c0_17, %c0_18, %c0_19], %21 {strides = array<i32>} : memref<8x2x2x32xf32, #tpu.memory_space<vmem>>, vector<1x1x2x32xf32>,
    %c0_20 = arith.constant 0 : index
    %c1 = arith.constant 1 : index
    %c0_21 = arith.constant 0 : index
    %c0_22 = arith.constant 0 : index
    %22 = vector.load %arg9[%c0_20, %c1, %c0_21, %c0_22] : memref<8x2x2x32xf32, #tpu.memory_space<vmem>>, vector<1x1x2x32xf32>
    %23 = vector.shape_cast %22 : vector<1x1x2x32xf32> to vector<2x32xf32>
    %24 = vector.shape_cast %18 : vector<2x32xf32> to vector<1x1x2x32xf32>
    tpu.vector_store %arg9[%c0_20, %c1, %c0_21, %c0_22], %24 {strides = array<i32>} : memref<8x2x2x32xf32, #tpu.memory_space<vmem>>, vector<1x1x2x32xf32>,
    %25 = vector.extract_strided_slice %15 {offsets = [0, 0], sizes = [2, 128], strides = [1, 1]} : vector<16x128xf32> to vector<2x128xf32>
    %cst_23 = arith.constant dense<0.000000e+00> : vector<2x128xf32>
    %26 = tpu.matmul %17, %16, %cst_23 {dimension_numbers = #tpu.dot_dimension_numbers<[1], [0], [0], [1], [0, 0, 1, 1], [], []>} : vector<2x32xf32>, vector<32x128xf32>, vector<2x128xf32> -> vector<2x128xf32>
    %27 = arith.addf %25, %26 : vector<2x128xf32>
    %28 = arith.negf %27 : vector<2x128xf32>
    %29 = math.exp %28 : vector<2x128xf32>
    %cst_24 = arith.constant 1.000000e+00 : f32
    %30 = vector.broadcast %cst_24 : f32 to vector<2x128xf32>
    %31 = arith.addf %30, %29 : vector<2x128xf32>
    %32 = arith.divf %30, %31 : vector<2x128xf32>
    %33 = math.tanh %27 : vector<2x128xf32>
    %34 = vector.extract_strided_slice %32 {offsets = [0, 0], sizes = [2, 32], strides = [1, 1]} : vector<2x128xf32> to vector<2x32xf32>
    %35 = vector.extract_strided_slice %32 {offsets = [0, 32], sizes = [2, 32], strides = [1, 1]} : vector<2x128xf32> to vector<2x32xf32>
    %36 = vector.extract_strided_slice %33 {offsets = [0, 64], sizes = [2, 32], strides = [1, 1]} : vector<2x128xf32> to vector<2x32xf32>
    %37 = vector.extract_strided_slice %32 {offsets = [0, 96], sizes = [2, 32], strides = [1, 1]} : vector<2x128xf32> to vector<2x32xf32>
    %38 = arith.mulf %35, %18 : vector<2x32xf32>
    %39 = arith.mulf %34, %36 : vector<2x32xf32>
    %40 = arith.addf %38, %39 : vector<2x32xf32>
    %41 = math.tanh %40 : vector<2x32xf32>
    %42 = arith.mulf %37, %41 : vector<2x32xf32>
    %c0_25 = arith.constant 0 : index
    %c0_26 = arith.constant 0 : index
    %c0_27 = arith.constant 0 : index
    %43 = vector.load %arg10[%c0_25, %c0_26, %c0_27] : memref<8x2x32xf32, #tpu.memory_space<vmem>>, vector<1x2x32xf32>
    %44 = vector.shape_cast %43 : vector<1x2x32xf32> to vector<2x32xf32>
    %45 = vector.shape_cast %42 : vector<2x32xf32> to vector<1x2x32xf32>
    tpu.vector_store %arg10[%c0_25, %c0_26, %c0_27], %45 {strides = array<i32>} : memref<8x2x32xf32, #tpu.memory_space<vmem>>, vector<1x2x32xf32>,
    %c1_28 = arith.constant 1 : index
    %c0_29 = arith.constant 0 : index
    %c0_30 = arith.constant 0 : index
    %c0_31 = arith.constant 0 : index
    %46 = vector.load %arg9[%c1_28, %c0_29, %c0_30, %c0_31] : memref<8x2x2x32xf32, #tpu.memory_space<vmem>>, vector<1x1x2x32xf32>
    %47 = vector.shape_cast %46 : vector<1x1x2x32xf32> to vector<2x32xf32>
    %48 = vector.shape_cast %42 : vector<2x32xf32> to vector<1x1x2x32xf32>
    tpu.vector_store %arg9[%c1_28, %c0_29, %c0_30, %c0_31], %48 {strides = array<i32>} : memref<8x2x2x32xf32, #tpu.memory_space<vmem>>, vector<1x1x2x32xf32>,
    %c1_32 = arith.constant 1 : index
    %c1_33 = arith.constant 1 : index
    %c0_34 = arith.constant 0 : index
    %c0_35 = arith.constant 0 : index
    %49 = vector.load %arg9[%c1_32, %c1_33, %c0_34, %c0_35] : memref<8x2x2x32xf32, #tpu.memory_space<vmem>>, vector<1x1x2x32xf32>
    %50 = vector.shape_cast %49 : vector<1x1x2x32xf32> to vector<2x32xf32>
    %51 = vector.shape_cast %40 : vector<2x32xf32> to vector<1x1x2x32xf32>
    tpu.vector_store %arg9[%c1_32, %c1_33, %c0_34, %c0_35], %51 {strides = array<i32>} : memref<8x2x2x32xf32, #tpu.memory_space<vmem>>, vector<1x1x2x32xf32>,
    %52 = vector.extract_strided_slice %15 {offsets = [2, 0], sizes = [2, 128], strides = [1, 1]} : vector<16x128xf32> to vector<2x128xf32>
    %cst_36 = arith.constant dense<0.000000e+00> : vector<2x128xf32>
    %53 = tpu.matmul %42, %16, %cst_36 {dimension_numbers = #tpu.dot_dimension_numbers<[1], [0], [0], [1], [0, 0, 1, 1], [], []>} : vector<2x32xf32>, vector<32x128xf32>, vector<2x128xf32> -> vector<2x128xf32>
    %54 = arith.addf %52, %53 : vector<2x128xf32>
    %55 = arith.negf %54 : vector<2x128xf32>
    %56 = math.exp %55 : vector<2x128xf32>
    %cst_37 = arith.constant 1.000000e+00 : f32
    %57 = vector.broadcast %cst_37 : f32 to vector<2x128xf32>
    %58 = arith.addf %57, %56 : vector<2x128xf32>
    %59 = arith.divf %57, %58 : vector<2x128xf32>
    %60 = math.tanh %54 : vector<2x128xf32>
    %61 = vector.extract_strided_slice %59 {offsets = [0, 0], sizes = [2, 32], strides = [1, 1]} : vector<2x128xf32> to vector<2x32xf32>
    %62 = vector.extract_strided_slice %59 {offsets = [0, 32], sizes = [2, 32], strides = [1, 1]} : vector<2x128xf32> to vector<2x32xf32>
    %63 = vector.extract_strided_slice %60 {offsets = [0, 64], sizes = [2, 32], strides = [1, 1]} : vector<2x128xf32> to vector<2x32xf32>
    %64 = vector.extract_strided_slice %59 {offsets = [0, 96], sizes = [2, 32], strides = [1, 1]} : vector<2x128xf32> to vector<2x32xf32>
    %65 = arith.mulf %62, %40 : vector<2x32xf32>
    %66 = arith.mulf %61, %63 : vector<2x32xf32>
    %67 = arith.addf %65, %66 : vector<2x32xf32>
    %68 = math.tanh %67 : vector<2x32xf32>
    %69 = arith.mulf %64, %68 : vector<2x32xf32>
    %c1_38 = arith.constant 1 : index
    %c0_39 = arith.constant 0 : index
    %c0_40 = arith.constant 0 : index
    %70 = vector.load %arg10[%c1_38, %c0_39, %c0_40] : memref<8x2x32xf32, #tpu.memory_space<vmem>>, vector<1x2x32xf32>
    %71 = vector.shape_cast %70 : vector<1x2x32xf32> to vector<2x32xf32>
    %72 = vector.shape_cast %69 : vector<2x32xf32> to vector<1x2x32xf32>
    tpu.vector_store %arg10[%c1_38, %c0_39, %c0_40], %72 {strides = array<i32>} : memref<8x2x32xf32, #tpu.memory_space<vmem>>, vector<1x2x32xf32>,
    %c2 = arith.constant 2 : index
    %c0_41 = arith.constant 0 : index
    %c0_42 = arith.constant 0 : index
    %c0_43 = arith.constant 0 : index
    %73 = vector.load %arg9[%c2, %c0_41, %c0_42, %c0_43] : memref<8x2x2x32xf32, #tpu.memory_space<vmem>>, vector<1x1x2x32xf32>
    %74 = vector.shape_cast %73 : vector<1x1x2x32xf32> to vector<2x32xf32>
    %75 = vector.shape_cast %69 : vector<2x32xf32> to vector<1x1x2x32xf32>
    tpu.vector_store %arg9[%c2, %c0_41, %c0_42, %c0_43], %75 {strides = array<i32>} : memref<8x2x2x32xf32, #tpu.memory_space<vmem>>, vector<1x1x2x32xf32>,
    %c2_44 = arith.constant 2 : index
    %c1_45 = arith.constant 1 : index
    %c0_46 = arith.constant 0 : index
    %c0_47 = arith.constant 0 : index
    %76 = vector.load %arg9[%c2_44, %c1_45, %c0_46, %c0_47] : memref<8x2x2x32xf32, #tpu.memory_space<vmem>>, vector<1x1x2x32xf32>
    %77 = vector.shape_cast %76 : vector<1x1x2x32xf32> to vector<2x32xf32>
    %78 = vector.shape_cast %67 : vector<2x32xf32> to vector<1x1x2x32xf32>
    tpu.vector_store %arg9[%c2_44, %c1_45, %c0_46, %c0_47], %78 {strides = array<i32>} : memref<8x2x2x32xf32, #tpu.memory_space<vmem>>, vector<1x1x2x32xf32>,
    %79 = vector.extract_strided_slice %15 {offsets = [4, 0], sizes = [2, 128], strides = [1, 1]} : vector<16x128xf32> to vector<2x128xf32>
    %cst_48 = arith.constant dense<0.000000e+00> : vector<2x128xf32>
    %80 = tpu.matmul %69, %16, %cst_48 {dimension_numbers = #tpu.dot_dimension_numbers<[1], [0], [0], [1], [0, 0, 1, 1], [], []>} : vector<2x32xf32>, vector<32x128xf32>, vector<2x128xf32> -> vector<2x128xf32>
    %81 = arith.addf %79, %80 : vector<2x128xf32>
    %82 = arith.negf %81 : vector<2x128xf32>
    %83 = math.exp %82 : vector<2x128xf32>
    %cst_49 = arith.constant 1.000000e+00 : f32
    %84 = vector.broadcast %cst_49 : f32 to vector<2x128xf32>
    %85 = arith.addf %84, %83 : vector<2x128xf32>
    %86 = arith.divf %84, %85 : vector<2x128xf32>
    %87 = math.tanh %81 : vector<2x128xf32>
    %88 = vector.extract_strided_slice %86 {offsets = [0, 0], sizes = [2, 32], strides = [1, 1]} : vector<2x128xf32> to vector<2x32xf32>
    %89 = vector.extract_strided_slice %86 {offsets = [0, 32], sizes = [2, 32], strides = [1, 1]} : vector<2x128xf32> to vector<2x32xf32>
    %90 = vector.extract_strided_slice %87 {offsets = [0, 64], sizes = [2, 32], strides = [1, 1]} : vector<2x128xf32> to vector<2x32xf32>
    %91 = vector.extract_strided_slice %86 {offsets = [0, 96], sizes = [2, 32], strides = [1, 1]} : vector<2x128xf32> to vector<2x32xf32>
    %92 = arith.mulf %89, %67 : vector<2x32xf32>
    %93 = arith.mulf %88, %90 : vector<2x32xf32>
    %94 = arith.addf %92, %93 : vector<2x32xf32>
    %95 = math.tanh %94 : vector<2x32xf32>
    %96 = arith.mulf %91, %95 : vector<2x32xf32>
    %c2_50 = arith.constant 2 : index
    %c0_51 = arith.constant 0 : index
    %c0_52 = arith.constant 0 : index
    %97 = vector.load %arg10[%c2_50, %c0_51, %c0_52] : memref<8x2x32xf32, #tpu.memory_space<vmem>>, vector<1x2x32xf32>
    %98 = vector.shape_cast %97 : vector<1x2x32xf32> to vector<2x32xf32>
    %99 = vector.shape_cast %96 : vector<2x32xf32> to vector<1x2x32xf32>
    tpu.vector_store %arg10[%c2_50, %c0_51, %c0_52], %99 {strides = array<i32>} : memref<8x2x32xf32, #tpu.memory_space<vmem>>, vector<1x2x32xf32>,
    %c3 = arith.constant 3 : index
    %c0_53 = arith.constant 0 : index
    %c0_54 = arith.constant 0 : index
    %c0_55 = arith.constant 0 : index
    %100 = vector.load %arg9[%c3, %c0_53, %c0_54, %c0_55] : memref<8x2x2x32xf32, #tpu.memory_space<vmem>>, vector<1x1x2x32xf32>
    %101 = vector.shape_cast %100 : vector<1x1x2x32xf32> to vector<2x32xf32>
    %102 = vector.shape_cast %96 : vector<2x32xf32> to vector<1x1x2x32xf32>
    tpu.vector_store %arg9[%c3, %c0_53, %c0_54, %c0_55], %102 {strides = array<i32>} : memref<8x2x2x32xf32, #tpu.memory_space<vmem>>, vector<1x1x2x32xf32>,
    %c3_56 = arith.constant 3 : index
    %c1_57 = arith.constant 1 : index
    %c0_58 = arith.constant 0 : index
    %c0_59 = arith.constant 0 : index
    %103 = vector.load %arg9[%c3_56, %c1_57, %c0_58, %c0_59] : memref<8x2x2x32xf32, #tpu.memory_space<vmem>>, vector<1x1x2x32xf32>
    %104 = vector.shape_cast %103 : vector<1x1x2x32xf32> to vector<2x32xf32>
    %105 = vector.shape_cast %94 : vector<2x32xf32> to vector<1x1x2x32xf32>
    tpu.vector_store %arg9[%c3_56, %c1_57, %c0_58, %c0_59], %105 {strides = array<i32>} : memref<8x2x2x32xf32, #tpu.memory_space<vmem>>, vector<1x1x2x32xf32>,
    %106 = vector.extract_strided_slice %15 {offsets = [6, 0], sizes = [2, 128], strides = [1, 1]} : vector<16x128xf32> to vector<2x128xf32>
    %cst_60 = arith.constant dense<0.000000e+00> : vector<2x128xf32>
    %107 = tpu.matmul %96, %16, %cst_60 {dimension_numbers = #tpu.dot_dimension_numbers<[1], [0], [0], [1], [0, 0, 1, 1], [], []>} : vector<2x32xf32>, vector<32x128xf32>, vector<2x128xf32> -> vector<2x128xf32>
    %108 = arith.addf %106, %107 : vector<2x128xf32>
    %109 = arith.negf %108 : vector<2x128xf32>
    %110 = math.exp %109 : vector<2x128xf32>
    %cst_61 = arith.constant 1.000000e+00 : f32
    %111 = vector.broadcast %cst_61 : f32 to vector<2x128xf32>
    %112 = arith.addf %111, %110 : vector<2x128xf32>
    %113 = arith.divf %111, %112 : vector<2x128xf32>
    %114 = math.tanh %108 : vector<2x128xf32>
    %115 = vector.extract_strided_slice %113 {offsets = [0, 0], sizes = [2, 32], strides = [1, 1]} : vector<2x128xf32> to vector<2x32xf32>
    %116 = vector.extract_strided_slice %113 {offsets = [0, 32], sizes = [2, 32], strides = [1, 1]} : vector<2x128xf32> to vector<2x32xf32>
    %117 = vector.extract_strided_slice %114 {offsets = [0, 64], sizes = [2, 32], strides = [1, 1]} : vector<2x128xf32> to vector<2x32xf32>
    %118 = vector.extract_strided_slice %113 {offsets = [0, 96], sizes = [2, 32], strides = [1, 1]} : vector<2x128xf32> to vector<2x32xf32>
    %119 = arith.mulf %116, %94 : vector<2x32xf32>
    %120 = arith.mulf %115, %117 : vector<2x32xf32>
    %121 = arith.addf %119, %120 : vector<2x32xf32>
    %122 = math.tanh %121 : vector<2x32xf32>
    %123 = arith.mulf %118, %122 : vector<2x32xf32>
    %c3_62 = arith.constant 3 : index
    %c0_63 = arith.constant 0 : index
    %c0_64 = arith.constant 0 : index
    %124 = vector.load %arg10[%c3_62, %c0_63, %c0_64] : memref<8x2x32xf32, #tpu.memory_space<vmem>>, vector<1x2x32xf32>
    %125 = vector.shape_cast %124 : vector<1x2x32xf32> to vector<2x32xf32>
    %126 = vector.shape_cast %123 : vector<2x32xf32> to vector<1x2x32xf32>
    tpu.vector_store %arg10[%c3_62, %c0_63, %c0_64], %126 {strides = array<i32>} : memref<8x2x32xf32, #tpu.memory_space<vmem>>, vector<1x2x32xf32>,
    %c4 = arith.constant 4 : index
    %c0_65 = arith.constant 0 : index
    %c0_66 = arith.constant 0 : index
    %c0_67 = arith.constant 0 : index
    %127 = vector.load %arg9[%c4, %c0_65, %c0_66, %c0_67] : memref<8x2x2x32xf32, #tpu.memory_space<vmem>>, vector<1x1x2x32xf32>
    %128 = vector.shape_cast %127 : vector<1x1x2x32xf32> to vector<2x32xf32>
    %129 = vector.shape_cast %123 : vector<2x32xf32> to vector<1x1x2x32xf32>
    tpu.vector_store %arg9[%c4, %c0_65, %c0_66, %c0_67], %129 {strides = array<i32>} : memref<8x2x2x32xf32, #tpu.memory_space<vmem>>, vector<1x1x2x32xf32>,
    %c4_68 = arith.constant 4 : index
    %c1_69 = arith.constant 1 : index
    %c0_70 = arith.constant 0 : index
    %c0_71 = arith.constant 0 : index
    %130 = vector.load %arg9[%c4_68, %c1_69, %c0_70, %c0_71] : memref<8x2x2x32xf32, #tpu.memory_space<vmem>>, vector<1x1x2x32xf32>
    %131 = vector.shape_cast %130 : vector<1x1x2x32xf32> to vector<2x32xf32>
    %132 = vector.shape_cast %121 : vector<2x32xf32> to vector<1x1x2x32xf32>
    tpu.vector_store %arg9[%c4_68, %c1_69, %c0_70, %c0_71], %132 {strides = array<i32>} : memref<8x2x2x32xf32, #tpu.memory_space<vmem>>, vector<1x1x2x32xf32>,
    %133 = vector.extract_strided_slice %15 {offsets = [8, 0], sizes = [2, 128], strides = [1, 1]} : vector<16x128xf32> to vector<2x128xf32>
    %cst_72 = arith.constant dense<0.000000e+00> : vector<2x128xf32>
    %134 = tpu.matmul %123, %16, %cst_72 {dimension_numbers = #tpu.dot_dimension_numbers<[1], [0], [0], [1], [0, 0, 1, 1], [], []>} : vector<2x32xf32>, vector<32x128xf32>, vector<2x128xf32> -> vector<2x128xf32>
    %135 = arith.addf %133, %134 : vector<2x128xf32>
    %136 = arith.negf %135 : vector<2x128xf32>
    %137 = math.exp %136 : vector<2x128xf32>
    %cst_73 = arith.constant 1.000000e+00 : f32
    %138 = vector.broadcast %cst_73 : f32 to vector<2x128xf32>
    %139 = arith.addf %138, %137 : vector<2x128xf32>
    %140 = arith.divf %138, %139 : vector<2x128xf32>
    %141 = math.tanh %135 : vector<2x128xf32>
    %142 = vector.extract_strided_slice %140 {offsets = [0, 0], sizes = [2, 32], strides = [1, 1]} : vector<2x128xf32> to vector<2x32xf32>
    %143 = vector.extract_strided_slice %140 {offsets = [0, 32], sizes = [2, 32], strides = [1, 1]} : vector<2x128xf32> to vector<2x32xf32>
    %144 = vector.extract_strided_slice %141 {offsets = [0, 64], sizes = [2, 32], strides = [1, 1]} : vector<2x128xf32> to vector<2x32xf32>
    %145 = vector.extract_strided_slice %140 {offsets = [0, 96], sizes = [2, 32], strides = [1, 1]} : vector<2x128xf32> to vector<2x32xf32>
    %146 = arith.mulf %143, %121 : vector<2x32xf32>
    %147 = arith.mulf %142, %144 : vector<2x32xf32>
    %148 = arith.addf %146, %147 : vector<2x32xf32>
    %149 = math.tanh %148 : vector<2x32xf32>
    %150 = arith.mulf %145, %149 : vector<2x32xf32>
    %c4_74 = arith.constant 4 : index
    %c0_75 = arith.constant 0 : index
    %c0_76 = arith.constant 0 : index
    %151 = vector.load %arg10[%c4_74, %c0_75, %c0_76] : memref<8x2x32xf32, #tpu.memory_space<vmem>>, vector<1x2x32xf32>
    %152 = vector.shape_cast %151 : vector<1x2x32xf32> to vector<2x32xf32>
    %153 = vector.shape_cast %150 : vector<2x32xf32> to vector<1x2x32xf32>
    tpu.vector_store %arg10[%c4_74, %c0_75, %c0_76], %153 {strides = array<i32>} : memref<8x2x32xf32, #tpu.memory_space<vmem>>, vector<1x2x32xf32>,
    %c5 = arith.constant 5 : index
    %c0_77 = arith.constant 0 : index
    %c0_78 = arith.constant 0 : index
    %c0_79 = arith.constant 0 : index
    %154 = vector.load %arg9[%c5, %c0_77, %c0_78, %c0_79] : memref<8x2x2x32xf32, #tpu.memory_space<vmem>>, vector<1x1x2x32xf32>
    %155 = vector.shape_cast %154 : vector<1x1x2x32xf32> to vector<2x32xf32>
    %156 = vector.shape_cast %150 : vector<2x32xf32> to vector<1x1x2x32xf32>
    tpu.vector_store %arg9[%c5, %c0_77, %c0_78, %c0_79], %156 {strides = array<i32>} : memref<8x2x2x32xf32, #tpu.memory_space<vmem>>, vector<1x1x2x32xf32>,
    %c5_80 = arith.constant 5 : index
    %c1_81 = arith.constant 1 : index
    %c0_82 = arith.constant 0 : index
    %c0_83 = arith.constant 0 : index
    %157 = vector.load %arg9[%c5_80, %c1_81, %c0_82, %c0_83] : memref<8x2x2x32xf32, #tpu.memory_space<vmem>>, vector<1x1x2x32xf32>
    %158 = vector.shape_cast %157 : vector<1x1x2x32xf32> to vector<2x32xf32>
    %159 = vector.shape_cast %148 : vector<2x32xf32> to vector<1x1x2x32xf32>
    tpu.vector_store %arg9[%c5_80, %c1_81, %c0_82, %c0_83], %159 {strides = array<i32>} : memref<8x2x2x32xf32, #tpu.memory_space<vmem>>, vector<1x1x2x32xf32>,
    %160 = vector.extract_strided_slice %15 {offsets = [10, 0], sizes = [2, 128], strides = [1, 1]} : vector<16x128xf32> to vector<2x128xf32>
    %cst_84 = arith.constant dense<0.000000e+00> : vector<2x128xf32>
    %161 = tpu.matmul %150, %16, %cst_84 {dimension_numbers = #tpu.dot_dimension_numbers<[1], [0], [0], [1], [0, 0, 1, 1], [], []>} : vector<2x32xf32>, vector<32x128xf32>, vector<2x128xf32> -> vector<2x128xf32>
    %162 = arith.addf %160, %161 : vector<2x128xf32>
    %163 = arith.negf %162 : vector<2x128xf32>
    %164 = math.exp %163 : vector<2x128xf32>
    %cst_85 = arith.constant 1.000000e+00 : f32
    %165 = vector.broadcast %cst_85 : f32 to vector<2x128xf32>
    %166 = arith.addf %165, %164 : vector<2x128xf32>
    %167 = arith.divf %165, %166 : vector<2x128xf32>
    %168 = math.tanh %162 : vector<2x128xf32>
    %169 = vector.extract_strided_slice %167 {offsets = [0, 0], sizes = [2, 32], strides = [1, 1]} : vector<2x128xf32> to vector<2x32xf32>
    %170 = vector.extract_strided_slice %167 {offsets = [0, 32], sizes = [2, 32], strides = [1, 1]} : vector<2x128xf32> to vector<2x32xf32>
    %171 = vector.extract_strided_slice %168 {offsets = [0, 64], sizes = [2, 32], strides = [1, 1]} : vector<2x128xf32> to vector<2x32xf32>
    %172 = vector.extract_strided_slice %167 {offsets = [0, 96], sizes = [2, 32], strides = [1, 1]} : vector<2x128xf32> to vector<2x32xf32>
    %173 = arith.mulf %170, %148 : vector<2x32xf32>
    %174 = arith.mulf %169, %171 : vector<2x32xf32>
    %175 = arith.addf %173, %174 : vector<2x32xf32>
    %176 = math.tanh %175 : vector<2x32xf32>
    %177 = arith.mulf %172, %176 : vector<2x32xf32>
    %c5_86 = arith.constant 5 : index
    %c0_87 = arith.constant 0 : index
    %c0_88 = arith.constant 0 : index
    %178 = vector.load %arg10[%c5_86, %c0_87, %c0_88] : memref<8x2x32xf32, #tpu.memory_space<vmem>>, vector<1x2x32xf32>
    %179 = vector.shape_cast %178 : vector<1x2x32xf32> to vector<2x32xf32>
    %180 = vector.shape_cast %177 : vector<2x32xf32> to vector<1x2x32xf32>
    tpu.vector_store %arg10[%c5_86, %c0_87, %c0_88], %180 {strides = array<i32>} : memref<8x2x32xf32, #tpu.memory_space<vmem>>, vector<1x2x32xf32>,
    %c6 = arith.constant 6 : index
    %c0_89 = arith.constant 0 : index
    %c0_90 = arith.constant 0 : index
    %c0_91 = arith.constant 0 : index
    %181 = vector.load %arg9[%c6, %c0_89, %c0_90, %c0_91] : memref<8x2x2x32xf32, #tpu.memory_space<vmem>>, vector<1x1x2x32xf32>
    %182 = vector.shape_cast %181 : vector<1x1x2x32xf32> to vector<2x32xf32>
    %183 = vector.shape_cast %177 : vector<2x32xf32> to vector<1x1x2x32xf32>
    tpu.vector_store %arg9[%c6, %c0_89, %c0_90, %c0_91], %183 {strides = array<i32>} : memref<8x2x2x32xf32, #tpu.memory_space<vmem>>, vector<1x1x2x32xf32>,
    %c6_92 = arith.constant 6 : index
    %c1_93 = arith.constant 1 : index
    %c0_94 = arith.constant 0 : index
    %c0_95 = arith.constant 0 : index
    %184 = vector.load %arg9[%c6_92, %c1_93, %c0_94, %c0_95] : memref<8x2x2x32xf32, #tpu.memory_space<vmem>>, vector<1x1x2x32xf32>
    %185 = vector.shape_cast %184 : vector<1x1x2x32xf32> to vector<2x32xf32>
    %186 = vector.shape_cast %175 : vector<2x32xf32> to vector<1x1x2x32xf32>
    tpu.vector_store %arg9[%c6_92, %c1_93, %c0_94, %c0_95], %186 {strides = array<i32>} : memref<8x2x2x32xf32, #tpu.memory_space<vmem>>, vector<1x1x2x32xf32>,
    %187 = vector.extract_strided_slice %15 {offsets = [12, 0], sizes = [2, 128], strides = [1, 1]} : vector<16x128xf32> to vector<2x128xf32>
    %cst_96 = arith.constant dense<0.000000e+00> : vector<2x128xf32>
    %188 = tpu.matmul %177, %16, %cst_96 {dimension_numbers = #tpu.dot_dimension_numbers<[1], [0], [0], [1], [0, 0, 1, 1], [], []>} : vector<2x32xf32>, vector<32x128xf32>, vector<2x128xf32> -> vector<2x128xf32>
    %189 = arith.addf %187, %188 : vector<2x128xf32>
    %190 = arith.negf %189 : vector<2x128xf32>
    %191 = math.exp %190 : vector<2x128xf32>
    %cst_97 = arith.constant 1.000000e+00 : f32
    %192 = vector.broadcast %cst_97 : f32 to vector<2x128xf32>
    %193 = arith.addf %192, %191 : vector<2x128xf32>
    %194 = arith.divf %192, %193 : vector<2x128xf32>
    %195 = math.tanh %189 : vector<2x128xf32>
    %196 = vector.extract_strided_slice %194 {offsets = [0, 0], sizes = [2, 32], strides = [1, 1]} : vector<2x128xf32> to vector<2x32xf32>
    %197 = vector.extract_strided_slice %194 {offsets = [0, 32], sizes = [2, 32], strides = [1, 1]} : vector<2x128xf32> to vector<2x32xf32>
    %198 = vector.extract_strided_slice %195 {offsets = [0, 64], sizes = [2, 32], strides = [1, 1]} : vector<2x128xf32> to vector<2x32xf32>
    %199 = vector.extract_strided_slice %194 {offsets = [0, 96], sizes = [2, 32], strides = [1, 1]} : vector<2x128xf32> to vector<2x32xf32>
    %200 = arith.mulf %197, %175 : vector<2x32xf32>
    %201 = arith.mulf %196, %198 : vector<2x32xf32>
    %202 = arith.addf %200, %201 : vector<2x32xf32>
    %203 = math.tanh %202 : vector<2x32xf32>
    %204 = arith.mulf %199, %203 : vector<2x32xf32>
    %c6_98 = arith.constant 6 : index
    %c0_99 = arith.constant 0 : index
    %c0_100 = arith.constant 0 : index
    %205 = vector.load %arg10[%c6_98, %c0_99, %c0_100] : memref<8x2x32xf32, #tpu.memory_space<vmem>>, vector<1x2x32xf32>
    %206 = vector.shape_cast %205 : vector<1x2x32xf32> to vector<2x32xf32>
    %207 = vector.shape_cast %204 : vector<2x32xf32> to vector<1x2x32xf32>
    tpu.vector_store %arg10[%c6_98, %c0_99, %c0_100], %207 {strides = array<i32>} : memref<8x2x32xf32, #tpu.memory_space<vmem>>, vector<1x2x32xf32>,
    %c7 = arith.constant 7 : index
    %c0_101 = arith.constant 0 : index
    %c0_102 = arith.constant 0 : index
    %c0_103 = arith.constant 0 : index
    %208 = vector.load %arg9[%c7, %c0_101, %c0_102, %c0_103] : memref<8x2x2x32xf32, #tpu.memory_space<vmem>>, vector<1x1x2x32xf32>
    %209 = vector.shape_cast %208 : vector<1x1x2x32xf32> to vector<2x32xf32>
    %210 = vector.shape_cast %204 : vector<2x32xf32> to vector<1x1x2x32xf32>
    tpu.vector_store %arg9[%c7, %c0_101, %c0_102, %c0_103], %210 {strides = array<i32>} : memref<8x2x2x32xf32, #tpu.memory_space<vmem>>, vector<1x1x2x32xf32>,
    %c7_104 = arith.constant 7 : index
    %c1_105 = arith.constant 1 : index
    %c0_106 = arith.constant 0 : index
    %c0_107 = arith.constant 0 : index
    %211 = vector.load %arg9[%c7_104, %c1_105, %c0_106, %c0_107] : memref<8x2x2x32xf32, #tpu.memory_space<vmem>>, vector<1x1x2x32xf32>
    %212 = vector.shape_cast %211 : vector<1x1x2x32xf32> to vector<2x32xf32>
    %213 = vector.shape_cast %202 : vector<2x32xf32> to vector<1x1x2x32xf32>
    tpu.vector_store %arg9[%c7_104, %c1_105, %c0_106, %c0_107], %213 {strides = array<i32>} : memref<8x2x2x32xf32, #tpu.memory_space<vmem>>, vector<1x1x2x32xf32>,
    %214 = vector.extract_strided_slice %15 {offsets = [14, 0], sizes = [2, 128], strides = [1, 1]} : vector<16x128xf32> to vector<2x128xf32>
    %cst_108 = arith.constant dense<0.000000e+00> : vector<2x128xf32>
    %215 = tpu.matmul %204, %16, %cst_108 {dimension_numbers = #tpu.dot_dimension_numbers<[1], [0], [0], [1], [0, 0, 1, 1], [], []>} : vector<2x32xf32>, vector<32x128xf32>, vector<2x128xf32> -> vector<2x128xf32>
    %216 = arith.addf %214, %215 : vector<2x128xf32>
    %217 = arith.negf %216 : vector<2x128xf32>
    %218 = math.exp %217 : vector<2x128xf32>
    %cst_109 = arith.constant 1.000000e+00 : f32
    %219 = vector.broadcast %cst_109 : f32 to vector<2x128xf32>
    %220 = arith.addf %219, %218 : vector<2x128xf32>
    %221 = arith.divf %219, %220 : vector<2x128xf32>
    %222 = math.tanh %216 : vector<2x128xf32>
    %223 = vector.extract_strided_slice %221 {offsets = [0, 0], sizes = [2, 32], strides = [1, 1]} : vector<2x128xf32> to vector<2x32xf32>
    %224 = vector.extract_strided_slice %221 {offsets = [0, 32], sizes = [2, 32], strides = [1, 1]} : vector<2x128xf32> to vector<2x32xf32>
    %225 = vector.extract_strided_slice %222 {offsets = [0, 64], sizes = [2, 32], strides = [1, 1]} : vector<2x128xf32> to vector<2x32xf32>
    %226 = vector.extract_strided_slice %221 {offsets = [0, 96], sizes = [2, 32], strides = [1, 1]} : vector<2x128xf32> to vector<2x32xf32>
    %227 = arith.mulf %224, %202 : vector<2x32xf32>
    %228 = arith.mulf %223, %225 : vector<2x32xf32>
    %229 = arith.addf %227, %228 : vector<2x32xf32>
    %230 = math.tanh %229 : vector<2x32xf32>
    %231 = arith.mulf %226, %230 : vector<2x32xf32>
    %c7_110 = arith.constant 7 : index
    %c0_111 = arith.constant 0 : index
    %c0_112 = arith.constant 0 : index
    %232 = vector.load %arg10[%c7_110, %c0_111, %c0_112] : memref<8x2x32xf32, #tpu.memory_space<vmem>>, vector<1x2x32xf32>
    %233 = vector.shape_cast %232 : vector<1x2x32xf32> to vector<2x32xf32>
    %234 = vector.shape_cast %231 : vector<2x32xf32> to vector<1x2x32xf32>
    tpu.vector_store %arg10[%c7_110, %c0_111, %c0_112], %234 {strides = array<i32>} : memref<8x2x32xf32, #tpu.memory_space<vmem>>, vector<1x2x32xf32>,
    %c0_113 = arith.constant 0 : index
    %c0_114 = arith.constant 0 : index
    %c0_115 = arith.constant 0 : index
    %235 = vector.load %arg10[%c0_113, %c0_114, %c0_115] : memref<8x2x32xf32, #tpu.memory_space<vmem>>, vector<8x2x32xf32>
    %cst_116 = arith.constant 0.000000e+00 : f32
    %236 = vector.broadcast %cst_116 : f32 to vector<8x2x32xf32>
    %237 = arith.cmpf ogt, %235, %236 : vector<8x2x32xf32>
    %cst_117 = arith.constant 0.00999999977 : f32
    %238 = vector.broadcast %cst_117 : f32 to vector<8x2x32xf32>
    %239 = arith.mulf %238, %235 : vector<8x2x32xf32>
    %240 = arith.select %237, %235, %239 : vector<8x2x32xi1>, vector<8x2x32xf32>
    %c0_118 = arith.constant 0 : index
    %c0_119 = arith.constant 0 : index
    %241 = vector.load %arg6[%c0_118, %c0_119] : memref<1x32xf32, #tpu.memory_space<vmem>>, vector<1x32xf32>
    %242 = vector.shape_cast %241 : vector<1x32xf32> to vector<1x1x32xf32>
    %243 = vector.broadcast %242 : vector<1x1x32xf32> to vector<8x2x32xf32>
    %244 = arith.mulf %240, %243 : vector<8x2x32xf32>
    %cst_120 = arith.constant dense<0.000000e+00> : vector<8x2xf32>
    %245 = vector.multi_reduction <add>, %244, %cst_120 [2] : vector<8x2x32xf32> to vector<8x2xf32>
    %c0_121 = arith.constant 0 : index
    %c0_122 = arith.constant 0 : index
    %246 = vector.load %arg7[%c0_121, %c0_122] : memref<1x1xf32, #tpu.memory_space<vmem>>, vector<1x1xf32>
    %247 = vector.broadcast %246 : vector<1x1xf32> to vector<8x2xf32>
    %248 = arith.addf %245, %247 : vector<8x2xf32>
    %c0_123 = arith.constant 0 : index
    %c0_124 = arith.constant 0 : index
    %249 = vector.load %arg8[%c0_123, %c0_124] : memref<8x2xf32, #tpu.memory_space<vmem>>, vector<8x2xf32>
    tpu.vector_store %arg8[%c0_123, %c0_124], %248 {strides = array<i32>} : memref<8x2xf32, #tpu.memory_space<vmem>>, vector<8x2xf32>,
    return
  }
}

</mosaic_0001>

<llo_original>
// kernel: value_network_lstm_forward.1
$region0: #{value_network_lstm_forward.1}
  #allocation0 [shape = 'u32[]', space=smem, size = 0x4, offset = 0x4, fixed_abs, tag = 'smem constant byte address 0x4 - core index']
  #allocation1 [shape = 'u32[144,128]{1,0:T(1,128)}', space=vmem, size = 0x12000, scoped, tag = 'internal scratch']
  #allocation2 [shape = 'f32[8,2,32]{2,1,0:T(2,128)}', space=vmem, size = 0x2000, scoped, tag = 'scratch operand']
  #allocation3 [shape = 'f32[1,1]{1,0:T(1,128)S(1)}', space=vmem, size = 0x200, scoped, tag = 'scoped memory for value_network_lstm_forward.1']
  %s0 = inlined_call_operand.hbm [shape: f32[16,16], index: 0, kind: input, shape index: {}]
  %s1 = inlined_call_operand.hbm [shape: f32[16,32], index: 1, kind: input, shape index: {}]
  %s2 = inlined_call_operand.vmem [shape: f32[1,32], index: 2, kind: input, shape index: {}]
  %s3 = inlined_call_operand.vmem [shape: f32[32,128], index: 3, kind: input, shape index: {}]
  %s4 = inlined_call_operand.hbm [shape: f32[32,128], index: 4, kind: input, shape index: {}]
  %s5 = inlined_call_operand.vmem [shape: f32[1,128], index: 5, kind: input, shape index: {}]
  %s6 = inlined_call_operand.vmem [shape: f32[1,32], index: 6, kind: input, shape index: {}]
  %s7 = inlined_call_operand.<no memory space> [shape: f32[1,1], index: 7, kind: input, shape index: {}]
  %s8 = inlined_call_operand.vmem [shape: f32[8,2], index: 8, kind: output, shape index: {0}]
  %s9 = inlined_call_operand.hbm [shape: f32[8,2,2,32], index: 9, kind: output, shape index: {1}]
  %10 = xla_tuple %s8, %s9
  %s11 = sld [smem:[#allocation0]]
  $region62: #{value_network_lstm_forward.1} parent=0
    _
  %s13 = ssub.s32 1, %s11
  %s14 = scalar_select 0, %s13, %s11
  %v15 = vstv %s7
  %16 = vst [vmem:[#allocation3] sm:$0x1] %v15
  $region1: #{value_network_lstm_forward.1} parent=0
    #allocation4 [shape = 'u8[8192]{0}', space=vmem, size = 0x2000, scoped, tag = 'input window, operand 0, single buffered']
    #allocation5 [shape = 's32[1]{0}', space=sflag, size = 0x4, scoped, tag = 'scoped memory for value_network_lstm_forward.1']
    #allocation6 [shape = 's32[1]{0}', space=sflag, size = 0x4, scoped, tag = 'scoped memory for value_network_lstm_forward.1']
    #allocation7 [shape = 'u8[8192]{0}', space=vmem, size = 0x2000, scoped, tag = 'input window, operand 1, single buffered']
    #allocation8 [shape = 's32[1]{0}', space=sflag, size = 0x4, scoped, tag = 'scoped memory for value_network_lstm_forward.1']
    #allocation9 [shape = 'u8[16384]{0}', space=vmem, size = 0x4000, scoped, tag = 'input window, operand 4, single buffered']
    #allocation10 [shape = 'u8[16384]{0}', space=vmem, size = 0x4000, scoped, tag = 'output window, operand 1, single buffered']
    %17 = vsyncpa [#allocation5], 0
    %18 = vsyncpa [#allocation8], 0
    %19 = vsyncpa [#allocation6], 0
    // Predicated region
    $region2: #{value_network_lstm_forward.1} parent=1 // pred_check
      _
    $region3: #{value_network_lstm_forward.1} parent=1 // pred_check_branch
      %21 = sbr.rel (0) target = $region5
    $region4: #{value_network_lstm_forward.1} parent=1 // pred_region
      %s23 = ssub.s32 256, 256
      %24 = vsyncadd [#allocation5], %s23
      %s25 = sshll.u32 [#allocation4], 4
      %s26 = int_to_ptr.vmem [resolvable:$true] %s25
      %31 = dma.hbm_to_vmem [thread:$0]  %s0, 256, %s26, [#allocation5], 128, 128, 8
    $region5: #{value_network_lstm_forward.1} parent=1 // pred_fallthru
      _
    // Predicated region
    $region6: #{value_network_lstm_forward.1} parent=1 // pred_check
      _
    $region7: #{value_network_lstm_forward.1} parent=1 // pred_check_branch
      %33 = sbr.rel (0) target = $region9
    $region8: #{value_network_lstm_forward.1} parent=1 // pred_region
      %s35 = ssub.s32 256, 256
      %36 = vsyncadd [#allocation8], %s35
      %s37 = sshll.u32 [#allocation7], 4
      %s38 = int_to_ptr.vmem [resolvable:$true] %s37
      %43 = dma.hbm_to_vmem [thread:$0]  %s1, 256, %s38, [#allocation8], 128, 128, 8
    $region9: #{value_network_lstm_forward.1} parent=1 // pred_fallthru
      _
    // Predicated region
    $region10: #{value_network_lstm_forward.1} parent=1 // pred_check
      _
    $region11: #{value_network_lstm_forward.1} parent=1 // pred_check_branch
      %45 = sbr.rel (0) target = $region13
    $region12: #{value_network_lstm_forward.1} parent=1 // pred_region
      _
    $region13: #{value_network_lstm_forward.1} parent=1 // pred_fallthru
      _
    // Predicated region
    $region14: #{value_network_lstm_forward.1} parent=1 // pred_check
      _
    $region15: #{value_network_lstm_forward.1} parent=1 // pred_check_branch
      %47 = sbr.rel (0) target = $region17
    $region16: #{value_network_lstm_forward.1} parent=1 // pred_region
      _
    $region17: #{value_network_lstm_forward.1} parent=1 // pred_fallthru
      _
    // Predicated region
    $region18: #{value_network_lstm_forward.1} parent=1 // pred_check
      _
    $region19: #{value_network_lstm_forward.1} parent=1 // pred_check_branch
      %49 = sbr.rel (0) target = $region21
    $region20: #{value_network_lstm_forward.1} parent=1 // pred_region
      %s51 = ssub.s32 512, 512
      %52 = vsyncadd [#allocation8], %s51
      %s53 = sshll.u32 [#allocation9], 4
      %s54 = int_to_ptr.vmem [resolvable:$true] %s53
      %59 = dma.hbm_to_vmem [thread:$0]  %s4, 512, %s54, [#allocation8], 128, 128, 8
    $region21: #{value_network_lstm_forward.1} parent=1 // pred_fallthru
      _
    // Predicated region
    $region22: #{value_network_lstm_forward.1} parent=1 // pred_check
      _
    $region23: #{value_network_lstm_forward.1} parent=1 // pred_check_branch
      %61 = sbr.rel (0) target = $region25
    $region24: #{value_network_lstm_forward.1} parent=1 // pred_region
      _
    $region25: #{value_network_lstm_forward.1} parent=1 // pred_fallthru
      _
    // Predicated region
    $region26: #{value_network_lstm_forward.1} parent=1 // pred_check
      _
    $region27: #{value_network_lstm_forward.1} parent=1 // pred_check_branch
      %63 = sbr.rel (0) target = $region29
    $region28: #{value_network_lstm_forward.1} parent=1 // pred_region
      _
    $region29: #{value_network_lstm_forward.1} parent=1 // pred_fallthru
      _
    // Predicated region
    $region30: #{value_network_lstm_forward.1} parent=1 // pred_check
      _
    $region31: #{value_network_lstm_forward.1} parent=1 // pred_check_branch
      %65 = sbr.rel (0) target = $region33
    $region32: #{value_network_lstm_forward.1} parent=1 // pred_region
      _
    $region33: #{value_network_lstm_forward.1} parent=1 // pred_fallthru
      _
    // Predicated region
    $region34: #{value_network_lstm_forward.1} parent=1 // pred_check
      _
    $region35: #{value_network_lstm_forward.1} parent=1 // pred_check_branch
      %67 = sbr.rel (0) target = $region37
    $region36: #{value_network_lstm_forward.1} parent=1 // pred_region
      %68 = dma.done [#allocation5], 256
    $region37: #{value_network_lstm_forward.1} parent=1 // pred_fallthru
      _
    // Predicated region
    $region38: #{value_network_lstm_forward.1} parent=1 // pred_check
      _
    $region39: #{value_network_lstm_forward.1} parent=1 // pred_check_branch
      %70 = sbr.rel (0) target = $region41
    $region40: #{value_network_lstm_forward.1} parent=1 // pred_region
      %71 = dma.done [#allocation8], 256
    $region41: #{value_network_lstm_forward.1} parent=1 // pred_fallthru
      _
    // Predicated region
    $region42: #{value_network_lstm_forward.1} parent=1 // pred_check
      _
    $region43: #{value_network_lstm_forward.1} parent=1 // pred_check_branch
      %73 = sbr.rel (0) target = $region45
    $region44: #{value_network_lstm_forward.1} parent=1 // pred_region
      %74 = dma.done [#allocation8], 512
    $region45: #{value_network_lstm_forward.1} parent=1 // pred_fallthru
      _
    %v75 = vld [vmem:[#allocation4] sm:$0xff]
    %v76 = vld [vmem:[#allocation4 + $0x8] sm:$0xff]
    %v77 = vld [vmem:[#allocation7] sm:$0xff]
    %v78 = vld [vmem:[#allocation7 + $0x8] sm:$0xff]
    %v79 = vld [vmem:[%s2] sm:$0x1]
    %v81 = vlaneseq
    %v82 = vshrl.u32 %v81, 7
    %v83 = vsub.s32 0, %v82
    %v84 = vrot.slane %v79, %v83
    %vm86 = vcmask 130048
    %v88 = vsel %vm86, %v75, 0
    %v91 = vsel %vm86, %v76, 0
    %93 = vmatprep.subr.mxu0 0.0
    %94 = vmatpush1.msra.mxu0 %v77
    %95 = vmatprep.subr.mxu0 0.0
    %96 = vmatpush1.msra.mxu0 %v78
    %97 = vmatprep.subr.mxu0 0.0
    %98 = vmatpush1.msra.mxu0 0.0
    %99 = vmatprep.subr.mxu0 0.0
    %100 = vmatpush1.msra.mxu0 0.0
    %101 = vmatprep.subr.mxu0 0.0
    %102 = vmatpush1.msra.mxu0 0.0
    %103 = vmatprep.subr.mxu0 0.0
    %104 = vmatpush1.msra.mxu0 0.0
    %105 = vmatprep.subr.mxu0 0.0
    %106 = vmatpush1.msra.mxu0 0.0
    %107 = vmatprep.subr.mxu0 0.0
    %108 = vmatpush1.msra.mxu0 0.0
    %109 = vmatprep.subr.mxu0 0.0
    %110 = vmatpush1.msra.mxu0 0.0
    %111 = vmatprep.subr.mxu0 0.0
    %112 = vmatpush1.msra.mxu0 0.0
    %113 = vmatprep.subr.mxu0 0.0
    %114 = vmatpush1.msra.mxu0 0.0
    %115 = vmatprep.subr.mxu0 0.0
    %116 = vmatpush1.msra.mxu0 0.0
    %117 = vmatprep.subr.mxu0 0.0
    %118 = vmatpush1.msra.mxu0 0.0
    %119 = vmatprep.subr.mxu0 0.0
    %120 = vmatpush1.msra.mxu0 0.0
    %121 = vmatprep.subr.mxu0 0.0
    %122 = vmatpush1.msra.mxu0 0.0
    %123 = vmatprep.subr.mxu0 0.0
    %124 = vmatpush1.msra.mxu0 0.0
    %125 = vmatprep.subr.mxu0 0.0
    %126 = vmatpush1.msra.mxu0 0.0
    %127 = vmatprep.subr.mxu0 0.0
    %128 = vmatpush1.msra.mxu0 0.0
    %129 = vmatprep.subr.mxu0 0.0
    %130 = vmatpush1.msra.mxu0 0.0
    %131 = vmatprep.subr.mxu0 0.0
    %132 = vmatpush1.msra.mxu0 0.0
    %133 = vmatprep.subr.mxu0 0.0
    %134 = vmatpush1.msra.mxu0 0.0
    %135 = vmatprep.subr.mxu0 0.0
    %136 = vmatpush1.msra.mxu0 0.0
    %137 = vmatprep.subr.mxu0 0.0
    %138 = vmatpush1.msra.mxu0 0.0
    %139 = vmatprep.subr.mxu0 0.0
    %140 = vmatpush1.msra.mxu0 0.0
    %141 = vmatprep.subr.mxu0 0.0
    %142 = vmatpush1.msra.mxu0 0.0
    %143 = vmatprep.subr.mxu0 0.0
    %144 = vmatpush1.msra.mxu0 0.0
    %145 = vmatprep.subr.mxu0 0.0
    %146 = vmatpush1.msra.mxu0 0.0
    %147 = vmatprep.subr.mxu0 0.0
    %148 = vmatpush1.msra.mxu0 0.0
    %149 = vmatprep.subr.mxu0 0.0
    %150 = vmatpush1.msra.mxu0 0.0
    %151 = vmatprep.subr.mxu0 0.0
    %152 = vmatpush1.msra.mxu0 0.0
    %153 = vmatprep.subr.mxu0 0.0
    %154 = vmatpush1.msra.mxu0 0.0
    %155 = vmatprep.subr.mxu0 0.0
    %156 = vmatpush1.msra.mxu0 0.0
    %157 = vmatprep.mubr.f32.mxu0 0.0
    %158 = vmatmul.mubr.f32.gmra.mrb[0].mxu0 %v88
    %v159 = vpop.f32.mrb[0].mxu0
    %v160 = vadd.f32 %v84, %v159
    %v161 = vpop.f32.mrb[0].mxu0
    %162 = vmatprep.mubr.f32.mxu0 0.0
    %163 = vmatmul.mubr.f32.gmra.mrb[0].mxu0 %v91
    %v164 = vpop.f32.mrb[0].mxu0
    %v165 = vadd.f32 %v84, %v164
    %v166 = vpop.f32.mrb[0].mxu0
    %167 = vdwg.mxu0
    %vm168 = vcmp.gt.f32.partialorder %v160, 0.0
    %vm169 = vcmp.gt.f32.partialorder %v165, 0.0
    %v170 = vmul.f32 %v160, 0.01
    %v171 = vmul.f32 %v165, 0.01
    %v172 = vsel %vm168, %v160, %v170
    %v173 = vsel %vm169, %v165, %v171
    %v174 = vld [vmem:[%s3] sm:$0xff]
    %v175 = vld [vmem:[%s3 + $0x8] sm:$0xff]
    %v176 = vld [vmem:[%s3 + $0x10] sm:$0xff]
    %v177 = vld [vmem:[%s3 + $0x18] sm:$0xff]
    %v178 = vld [vmem:[%s5] sm:$0x1]
    %v180 = vlaneseq
    %v181 = vshrl.u32 %v180, 7
    %v182 = vsub.s32 0, %v181
    %v183 = vrot.slane %v178, %v182
    %vm185 = vcmask 261120
    %v187 = vsel %vm185, %v172, 0
    %v190 = vsel %vm185, %v173, 0
    %192 = vmatprep.subr.mxu0 0.0
    %193 = vmatpush1.msra.mxu0 %v174
    %194 = vmatprep.subr.mxu0 0.0
    %195 = vmatpush1.msra.mxu0 %v175
    %196 = vmatprep.subr.mxu0 0.0
    %197 = vmatpush1.msra.mxu0 %v176
    %198 = vmatprep.subr.mxu0 0.0
    %199 = vmatpush1.msra.mxu0 %v177
    %200 = vmatprep.subr.mxu0 0.0
    %201 = vmatpush1.msra.mxu0 0.0
    %202 = vmatprep.subr.mxu0 0.0
    %203 = vmatpush1.msra.mxu0 0.0
    %204 = vmatprep.subr.mxu0 0.0
    %205 = vmatpush1.msra.mxu0 0.0
    %206 = vmatprep.subr.mxu0 0.0
    %207 = vmatpush1.msra.mxu0 0.0
    %208 = vmatprep.subr.mxu0 0.0
    %209 = vmatpush1.msra.mxu0 0.0
    %210 = vmatprep.subr.mxu0 0.0
    %211 = vmatpush1.msra.mxu0 0.0
    %212 = vmatprep.subr.mxu0 0.0
    %213 = vmatpush1.msra.mxu0 0.0
    %214 = vmatprep.subr.mxu0 0.0
    %215 = vmatpush1.msra.mxu0 0.0
    %216 = vmatprep.subr.mxu0 0.0
    %217 = vmatpush1.msra.mxu0 0.0
    %218 = vmatprep.subr.mxu0 0.0
    %219 = vmatpush1.msra.mxu0 0.0
    %220 = vmatprep.subr.mxu0 0.0
    %221 = vmatpush1.msra.mxu0 0.0
    %222 = vmatprep.subr.mxu0 0.0
    %223 = vmatpush1.msra.mxu0 0.0
    %224 = vmatprep.subr.mxu0 0.0
    %225 = vmatpush1.msra.mxu0 0.0
    %226 = vmatprep.subr.mxu0 0.0
    %227 = vmatpush1.msra.mxu0 0.0
    %228 = vmatprep.subr.mxu0 0.0
    %229 = vmatpush1.msra.mxu0 0.0
    %230 = vmatprep.subr.mxu0 0.0
    %231 = vmatpush1.msra.mxu0 0.0
    %232 = vmatprep.subr.mxu0 0.0
    %233 = vmatpush1.msra.mxu0 0.0
    %234 = vmatprep.subr.mxu0 0.0
    %235 = vmatpush1.msra.mxu0 0.0
    %236 = vmatprep.subr.mxu0 0.0
    %237 = vmatpush1.msra.mxu0 0.0
    %238 = vmatprep.subr.mxu0 0.0
    %239 = vmatpush1.msra.mxu0 0.0
    %240 = vmatprep.subr.mxu0 0.0
    %241 = vmatpush1.msra.mxu0 0.0
    %242 = vmatprep.subr.mxu0 0.0
    %243 = vmatpush1.msra.mxu0 0.0
    %244 = vmatprep.subr.mxu0 0.0
    %245 = vmatpush1.msra.mxu0 0.0
    %246 = vmatprep.subr.mxu0 0.0
    %247 = vmatpush1.msra.mxu0 0.0
    %248 = vmatprep.subr.mxu0 0.0
    %249 = vmatpush1.msra.mxu0 0.0
    %250 = vmatprep.subr.mxu0 0.0
    %251 = vmatpush1.msra.mxu0 0.0
    %252 = vmatprep.subr.mxu0 0.0
    %253 = vmatpush1.msra.mxu0 0.0
    %254 = vmatprep.subr.mxu0 0.0
    %255 = vmatpush1.msra.mxu0 0.0
    %256 = vmatprep.mubr.f32.mxu0 0.0
    %257 = vmatmul.mubr.f32.gmra.mrb[0].mxu0 %v187
    %v258 = vpop.f32.mrb[0].mxu0
    %v259 = vadd.f32 %v183, %v258
    %v260 = vpop.f32.mrb[0].mxu0
    %261 = vmatprep.mubr.f32.mxu0 0.0
    %262 = vmatmul.mubr.f32.gmra.mrb[0].mxu0 %v190
    %v263 = vpop.f32.mrb[0].mxu0
    %v264 = vadd.f32 %v183, %v263
    %v265 = vpop.f32.mrb[0].mxu0
    %266 = vdwg.mxu0
    %v267 = vld [vmem:[#allocation9] sm:$0xff]
    %v268 = vld [vmem:[#allocation9 + $0x8] sm:$0xff]
    %v269 = vld [vmem:[#allocation9 + $0x10] sm:$0xff]
    %v270 = vld [vmem:[#allocation9 + $0x18] sm:$0xff]
    %vm271 = vcmask 254976
    %272 = vst.msk [vmem:[#allocation10] sm:$0x3] %vm271, 0.0
    %s273 = scalar_lea.vmem [#allocation10], 2
    %274 = vst.msk [vmem:[%s273] sm:$0x3] %vm271, 0.0
    %v276 = vsel %vm185, 0.0, 0
    %278 = vmatprep.subr.mxu0 0.0
    %279 = vmatpush1.msra.mxu0 %v267
    %280 = vmatprep.subr.mxu0 0.0
    %281 = vmatpush1.msra.mxu0 %v268
    %282 = vmatprep.subr.mxu0 0.0
    %283 = vmatpush1.msra.mxu0 %v269
    %284 = vmatprep.subr.mxu0 0.0
    %285 = vmatpush1.msra.mxu0 %v270
    %286 = vmatprep.subr.mxu0 0.0
    %287 = vmatpush1.msra.mxu0 0.0
    %288 = vmatprep.subr.mxu0 0.0
    %289 = vmatpush1.msra.mxu0 0.0
    %290 = vmatprep.subr.mxu0 0.0
    %291 = vmatpush1.msra.mxu0 0.0
    %292 = vmatprep.subr.mxu0 0.0
    %293 = vmatpush1.msra.mxu0 0.0
    %294 = vmatprep.subr.mxu0 0.0
    %295 = vmatpush1.msra.mxu0 0.0
    %296 = vmatprep.subr.mxu0 0.0
    %297 = vmatpush1.msra.mxu0 0.0
    %298 = vmatprep.subr.mxu0 0.0
    %299 = vmatpush1.msra.mxu0 0.0
    %300 = vmatprep.subr.mxu0 0.0
    %301 = vmatpush1.msra.mxu0 0.0
    %302 = vmatprep.subr.mxu0 0.0
    %303 = vmatpush1.msra.mxu0 0.0
    %304 = vmatprep.subr.mxu0 0.0
    %305 = vmatpush1.msra.mxu0 0.0
    %306 = vmatprep.subr.mxu0 0.0
    %307 = vmatpush1.msra.mxu0 0.0
    %308 = vmatprep.subr.mxu0 0.0
    %309 = vmatpush1.msra.mxu0 0.0
    %310 = vmatprep.subr.mxu0 0.0
    %311 = vmatpush1.msra.mxu0 0.0
    %312 = vmatprep.subr.mxu0 0.0
    %313 = vmatpush1.msra.mxu0 0.0
    %314 = vmatprep.subr.mxu0 0.0
    %315 = vmatpush1.msra.mxu0 0.0
    %316 = vmatprep.subr.mxu0 0.0
    %317 = vmatpush1.msra.mxu0 0.0
    %318 = vmatprep.subr.mxu0 0.0
    %319 = vmatpush1.msra.mxu0 0.0
    %320 = vmatprep.subr.mxu0 0.0
    %321 = vmatpush1.msra.mxu0 0.0
    %322 = vmatprep.subr.mxu0 0.0
    %323 = vmatpush1.msra.mxu0 0.0
    %324 = vmatprep.subr.mxu0 0.0
    %325 = vmatpush1.msra.mxu0 0.0
    %326 = vmatprep.subr.mxu0 0.0
    %327 = vmatpush1.msra.mxu0 0.0
    %328 = vmatprep.subr.mxu0 0.0
    %329 = vmatpush1.msra.mxu0 0.0
    %330 = vmatprep.subr.mxu0 0.0
    %331 = vmatpush1.msra.mxu0 0.0
    %332 = vmatprep.subr.mxu0 0.0
    %333 = vmatpush1.msra.mxu0 0.0
    %334 = vmatprep.subr.mxu0 0.0
    %335 = vmatpush1.msra.mxu0 0.0
    %336 = vmatprep.subr.mxu0 0.0
    %337 = vmatpush1.msra.mxu0 0.0
    %338 = vmatprep.subr.mxu0 0.0
    %339 = vmatpush1.msra.mxu0 0.0
    %340 = vmatprep.subr.mxu0 0.0
    %341 = vmatpush1.msra.mxu0 0.0
    %342 = vmatprep.mubr.f32.mxu0 0.0
    %343 = vmatmul.mubr.f32.gmra.mrb[0].mxu0 %v276
    %v344 = vpop.f32.mrb[0].mxu0
    %v345 = vadd.f32 0.0, %v344
    %v346 = vpop.f32.mrb[0].mxu0
    %347 = vdwg.mxu0
    %v348 = vadd.f32 %v259, %v345
    %v349 = vxor.u32 %v348, 2147483648
    %v350 = vmul.f32 %v349, 1.442695
    %v351 = vpow.pop %v350
    %v352 = vadd.f32 %v351, 1.0
    %v353 = vrcp.pop %v352
    %v354 = vmul.f32 1.0, %v353
    %v355 = vtanh.pop %v348
    %v356 = vmul.f32 %v354, 0.0
    %358 = vrot.lane.b32.xlu0 %v355, 64
    %v359 = vpop.permute.xlu0 %358
    %v361 = vmul.f32 %v354, %v359
    %363 = vrot.lane.b32.xlu0 %v361, 32
    %v364 = vpop.permute.xlu0 %363
    %v366 = vadd.f32 %v356, %v364
    %v367 = vtanh.pop %v366
    %369 = vrot.lane.b32.xlu0 %v367, 64
    %v370 = vpop.permute.xlu0 %369
    %v372 = vmul.f32 %v354, %v370
    %374 = vrot.lane.b32.xlu0 %v372, 32
    %v375 = vpop.permute.xlu0 %374
    %377 = vst.msk [vmem:[#allocation2] sm:$0x3] %vm271, %v375
    %s378 = scalar_lea.vmem [#allocation10], 4
    %379 = vst.msk [vmem:[%s378] sm:$0x3] %vm271, %v375
    %381 = vrot.lane.b32.xlu0 %v366, 96
    %v382 = vpop.permute.xlu0 %381
    %s384 = scalar_lea.vmem [#allocation10], 6
    %385 = vst.msk [vmem:[%s384] sm:$0x3] %vm271, %v382
    %v386 = vsel %vm185, %v375, 0
    %388 = vmatprep.subr.mxu0 0.0
    %389 = vmatpush1.msra.mxu0 %v267
    %390 = vmatprep.subr.mxu0 0.0
    %391 = vmatpush1.msra.mxu0 %v268
    %392 = vmatprep.subr.mxu0 0.0
    %393 = vmatpush1.msra.mxu0 %v269
    %394 = vmatprep.subr.mxu0 0.0
    %395 = vmatpush1.msra.mxu0 %v270
    %396 = vmatprep.subr.mxu0 0.0
    %397 = vmatpush1.msra.mxu0 0.0
    %398 = vmatprep.subr.mxu0 0.0
    %399 = vmatpush1.msra.mxu0 0.0
    %400 = vmatprep.subr.mxu0 0.0
    %401 = vmatpush1.msra.mxu0 0.0
    %402 = vmatprep.subr.mxu0 0.0
    %403 = vmatpush1.msra.mxu0 0.0
    %404 = vmatprep.subr.mxu0 0.0
    %405 = vmatpush1.msra.mxu0 0.0
    %406 = vmatprep.subr.mxu0 0.0
    %407 = vmatpush1.msra.mxu0 0.0
    %408 = vmatprep.subr.mxu0 0.0
    %409 = vmatpush1.msra.mxu0 0.0
    %410 = vmatprep.subr.mxu0 0.0
    %411 = vmatpush1.msra.mxu0 0.0
    %412 = vmatprep.subr.mxu0 0.0
    %413 = vmatpush1.msra.mxu0 0.0
    %414 = vmatprep.subr.mxu0 0.0
    %415 = vmatpush1.msra.mxu0 0.0
    %416 = vmatprep.subr.mxu0 0.0
    %417 = vmatpush1.msra.mxu0 0.0
    %418 = vmatprep.subr.mxu0 0.0
    %419 = vmatpush1.msra.mxu0 0.0
    %420 = vmatprep.subr.mxu0 0.0
    %421 = vmatpush1.msra.mxu0 0.0
    %422 = vmatprep.subr.mxu0 0.0
    %423 = vmatpush1.msra.mxu0 0.0
    %424 = vmatprep.subr.mxu0 0.0
    %425 = vmatpush1.msra.mxu0 0.0
    %426 = vmatprep.subr.mxu0 0.0
    %427 = vmatpush1.msra.mxu0 0.0
    %428 = vmatprep.subr.mxu0 0.0
    %429 = vmatpush1.msra.mxu0 0.0
    %430 = vmatprep.subr.mxu0 0.0
    %431 = vmatpush1.msra.mxu0 0.0
    %432 = vmatprep.subr.mxu0 0.0
    %433 = vmatpush1.msra.mxu0 0.0
    %434 = vmatprep.subr.mxu0 0.0
    %435 = vmatpush1.msra.mxu0 0.0
    %436 = vmatprep.subr.mxu0 0.0
    %437 = vmatpush1.msra.mxu0 0.0
    %438 = vmatprep.subr.mxu0 0.0
    %439 = vmatpush1.msra.mxu0 0.0
    %440 = vmatprep.subr.mxu0 0.0
    %441 = vmatpush1.msra.mxu0 0.0
    %442 = vmatprep.subr.mxu0 0.0
    %443 = vmatpush1.msra.mxu0 0.0
    %444 = vmatprep.subr.mxu0 0.0
    %445 = vmatpush1.msra.mxu0 0.0
    %446 = vmatprep.subr.mxu0 0.0
    %447 = vmatpush1.msra.mxu0 0.0
    %448 = vmatprep.subr.mxu0 0.0
    %449 = vmatpush1.msra.mxu0 0.0
    %450 = vmatprep.subr.mxu0 0.0
    %451 = vmatpush1.msra.mxu0 0.0
    %452 = vmatprep.mubr.f32.mxu0 0.0
    %453 = vmatmul.mubr.f32.gmra.mrb[0].mxu0 %v386
    %v454 = vpop.f32.mrb[0].mxu0
    %v455 = vadd.f32 0.0, %v454
    %v456 = vpop.f32.mrb[0].mxu0
    %457 = vdwg.mxu0
    %v459 = vrot.slane %v455, 6
    %v461 = vadd.f32 %v259, %v459
    %v462 = vxor.u32 %v461, 2147483648
    %v463 = vmul.f32 %v462, 1.442695
    %v464 = vpow.pop %v463
    %v465 = vadd.f32 %v464, 1.0
    %v466 = vrcp.pop %v465
    %v467 = vmul.f32 1.0, %v466
    %v468 = vtanh.pop %v461
    %v469 = vrot.slane %v366, 6
    %v471 = vmul.f32 %v467, %v469
    %473 = vrot.lane.b32.xlu0 %v468, 64
    %v474 = vpop.permute.xlu0 %473
    %v476 = vmul.f32 %v467, %v474
    %478 = vrot.lane.b32.xlu0 %v476, 32
    %v479 = vpop.permute.xlu0 %478
    %v481 = vadd.f32 %v471, %v479
    %v482 = vtanh.pop %v481
    %484 = vrot.lane.b32.xlu0 %v482, 64
    %v485 = vpop.permute.xlu0 %484
    %v487 = vmul.f32 %v467, %v485
    %489 = vrot.lane.b32.xlu0 %v487, 32
    %v490 = vpop.permute.xlu0 %489
    %s492 = scalar_lea.vmem [#allocation2], 2
    %vm493 = vcmask 257026
    %494 = vst.msk [vmem:[%s492 - $0x2] sm:$0xc] %vm493, %v490
    %s495 = scalar_lea.vmem [#allocation10], 8
    %496 = vst.msk [vmem:[%s495 - $0x2] sm:$0xc] %vm493, %v490
    %498 = vrot.lane.b32.xlu0 %v481, 96
    %v499 = vpop.permute.xlu0 %498
    %s501 = scalar_lea.vmem [#allocation10], 10
    %502 = vst.msk [vmem:[%s501 - $0x2] sm:$0xc] %vm493, %v499
    %v503 = vrot.slane %v487, 2
    %504 = vrot.lane.b32.xlu0 %v503, 32
    %v505 = vpop.permute.xlu0 %504
    %v506 = vsel %vm185, %v505, 0
    %508 = vmatprep.subr.mxu0 0.0
    %509 = vmatpush1.msra.mxu0 %v267
    %510 = vmatprep.subr.mxu0 0.0
    %511 = vmatpush1.msra.mxu0 %v268
    %512 = vmatprep.subr.mxu0 0.0
    %513 = vmatpush1.msra.mxu0 %v269
    %514 = vmatprep.subr.mxu0 0.0
    %515 = vmatpush1.msra.mxu0 %v270
    %516 = vmatprep.subr.mxu0 0.0
    %517 = vmatpush1.msra.mxu0 0.0
    %518 = vmatprep.subr.mxu0 0.0
    %519 = vmatpush1.msra.mxu0 0.0
    %520 = vmatprep.subr.mxu0 0.0
    %521 = vmatpush1.msra.mxu0 0.0
    %522 = vmatprep.subr.mxu0 0.0
    %523 = vmatpush1.msra.mxu0 0.0
    %524 = vmatprep.subr.mxu0 0.0
    %525 = vmatpush1.msra.mxu0 0.0
    %526 = vmatprep.subr.mxu0 0.0
    %527 = vmatpush1.msra.mxu0 0.0
    %528 = vmatprep.subr.mxu0 0.0
    %529 = vmatpush1.msra.mxu0 0.0
    %530 = vmatprep.subr.mxu0 0.0
    %531 = vmatpush1.msra.mxu0 0.0
    %532 = vmatprep.subr.mxu0 0.0
    %533 = vmatpush1.msra.mxu0 0.0
    %534 = vmatprep.subr.mxu0 0.0
    %535 = vmatpush1.msra.mxu0 0.0
    %536 = vmatprep.subr.mxu0 0.0
    %537 = vmatpush1.msra.mxu0 0.0
    %538 = vmatprep.subr.mxu0 0.0
    %539 = vmatpush1.msra.mxu0 0.0
    %540 = vmatprep.subr.mxu0 0.0
    %541 = vmatpush1.msra.mxu0 0.0
    %542 = vmatprep.subr.mxu0 0.0
    %543 = vmatpush1.msra.mxu0 0.0
    %544 = vmatprep.subr.mxu0 0.0
    %545 = vmatpush1.msra.mxu0 0.0
    %546 = vmatprep.subr.mxu0 0.0
    %547 = vmatpush1.msra.mxu0 0.0
    %548 = vmatprep.subr.mxu0 0.0
    %549 = vmatpush1.msra.mxu0 0.0
    %550 = vmatprep.subr.mxu0 0.0
    %551 = vmatpush1.msra.mxu0 0.0
    %552 = vmatprep.subr.mxu0 0.0
    %553 = vmatpush1.msra.mxu0 0.0
    %554 = vmatprep.subr.mxu0 0.0
    %555 = vmatpush1.msra.mxu0 0.0
    %556 = vmatprep.subr.mxu0 0.0
    %557 = vmatpush1.msra.mxu0 0.0
    %558 = vmatprep.subr.mxu0 0.0
    %559 = vmatpush1.msra.mxu0 0.0
    %560 = vmatprep.subr.mxu0 0.0
    %561 = vmatpush1.msra.mxu0 0.0
    %562 = vmatprep.subr.mxu0 0.0
    %563 = vmatpush1.msra.mxu0 0.0
    %564 = vmatprep.subr.mxu0 0.0
    %565 = vmatpush1.msra.mxu0 0.0
    %566 = vmatprep.subr.mxu0 0.0
    %567 = vmatpush1.msra.mxu0 0.0
    %568 = vmatprep.subr.mxu0 0.0
    %569 = vmatpush1.msra.mxu0 0.0
    %570 = vmatprep.subr.mxu0 0.0
    %571 = vmatpush1.msra.mxu0 0.0
    %572 = vmatprep.mubr.f32.mxu0 0.0
    %573 = vmatmul.mubr.f32.gmra.mrb[0].mxu0 %v506
    %v574 = vpop.f32.mrb[0].mxu0
    %v575 = vadd.f32 0.0, %v574
    %v576 = vpop.f32.mrb[0].mxu0
    %577 = vdwg.mxu0
    %v579 = vrot.slane %v575, 4
    %v581 = vadd.f32 %v259, %v579
    %v582 = vxor.u32 %v581, 2147483648
    %v583 = vmul.f32 %v582, 1.442695
    %v584 = vpow.pop %v583
    %v585 = vadd.f32 %v584, 1.0
    %v586 = vrcp.pop %v585
    %v587 = vmul.f32 1.0, %v586
    %v588 = vtanh.pop %v581
    %v589 = vrot.slane %v481, 6
    %v591 = vmul.f32 %v587, %v589
    %593 = vrot.lane.b32.xlu0 %v588, 64
    %v594 = vpop.permute.xlu0 %593
    %v596 = vmul.f32 %v587, %v594
    %598 = vrot.lane.b32.xlu0 %v596, 32
    %v599 = vpop.permute.xlu0 %598
    %v601 = vadd.f32 %v591, %v599
    %v602 = vtanh.pop %v601
    %604 = vrot.lane.b32.xlu0 %v602, 64
    %v605 = vpop.permute.xlu0 %604
    %v607 = vmul.f32 %v587, %v605
    %609 = vrot.lane.b32.xlu0 %v607, 32
    %v610 = vpop.permute.xlu0 %609
    %s612 = scalar_lea.vmem [#allocation2], 4
    %vm613 = vcmask 259076
    %614 = vst.msk [vmem:[%s612 - $0x4] sm:$0x30] %vm613, %v610
    %s615 = scalar_lea.vmem [#allocation10], 12
    %616 = vst.msk [vmem:[%s615 - $0x4] sm:$0x30] %vm613, %v610
    %618 = vrot.lane.b32.xlu0 %v601, 96
    %v619 = vpop.permute.xlu0 %618
    %s621 = scalar_lea.vmem [#allocation10], 14
    %622 = vst.msk [vmem:[%s621 - $0x4] sm:$0x30] %vm613, %v619
    %v623 = vrot.slane %v607, 4
    %624 = vrot.lane.b32.xlu0 %v623, 32
    %v625 = vpop.permute.xlu0 %624
    %v626 = vsel %vm185, %v625, 0
    %628 = vmatprep.subr.mxu0 0.0
    %629 = vmatpush1.msra.mxu0 %v267
    %630 = vmatprep.subr.mxu0 0.0
    %631 = vmatpush1.msra.mxu0 %v268
    %632 = vmatprep.subr.mxu0 0.0
    %633 = vmatpush1.msra.mxu0 %v269
    %634 = vmatprep.subr.mxu0 0.0
    %635 = vmatpush1.msra.mxu0 %v270
    %636 = vmatprep.subr.mxu0 0.0
    %637 = vmatpush1.msra.mxu0 0.0
    %638 = vmatprep.subr.mxu0 0.0
    %639 = vmatpush1.msra.mxu0 0.0
    %640 = vmatprep.subr.mxu0 0.0
    %641 = vmatpush1.msra.mxu0 0.0
    %642 = vmatprep.subr.mxu0 0.0
    %643 = vmatpush1.msra.mxu0 0.0
    %644 = vmatprep.subr.mxu0 0.0
    %645 = vmatpush1.msra.mxu0 0.0
    %646 = vmatprep.subr.mxu0 0.0
    %647 = vmatpush1.msra.mxu0 0.0
    %648 = vmatprep.subr.mxu0 0.0
    %649 = vmatpush1.msra.mxu0 0.0
    %650 = vmatprep.subr.mxu0 0.0
    %651 = vmatpush1.msra.mxu0 0.0
    %652 = vmatprep.subr.mxu0 0.0
    %653 = vmatpush1.msra.mxu0 0.0
    %654 = vmatprep.subr.mxu0 0.0
    %655 = vmatpush1.msra.mxu0 0.0
    %656 = vmatprep.subr.mxu0 0.0
    %657 = vmatpush1.msra.mxu0 0.0
    %658 = vmatprep.subr.mxu0 0.0
    %659 = vmatpush1.msra.mxu0 0.0
    %660 = vmatprep.subr.mxu0 0.0
    %661 = vmatpush1.msra.mxu0 0.0
    %662 = vmatprep.subr.mxu0 0.0
    %663 = vmatpush1.msra.mxu0 0.0
    %664 = vmatprep.subr.mxu0 0.0
    %665 = vmatpush1.msra.mxu0 0.0
    %666 = vmatprep.subr.mxu0 0.0
    %667 = vmatpush1.msra.mxu0 0.0
    %668 = vmatprep.subr.mxu0 0.0
    %669 = vmatpush1.msra.mxu0 0.0
    %670 = vmatprep.subr.mxu0 0.0
    %671 = vmatpush1.msra.mxu0 0.0
    %672 = vmatprep.subr.mxu0 0.0
    %673 = vmatpush1.msra.mxu0 0.0
    %674 = vmatprep.subr.mxu0 0.0
    %675 = vmatpush1.msra.mxu0 0.0
    %676 = vmatprep.subr.mxu0 0.0
    %677 = vmatpush1.msra.mxu0 0.0
    %678 = vmatprep.subr.mxu0 0.0
    %679 = vmatpush1.msra.mxu0 0.0
    %680 = vmatprep.subr.mxu0 0.0
    %681 = vmatpush1.msra.mxu0 0.0
    %682 = vmatprep.subr.mxu0 0.0
    %683 = vmatpush1.msra.mxu0 0.0
    %684 = vmatprep.subr.mxu0 0.0
    %685 = vmatpush1.msra.mxu0 0.0
    %686 = vmatprep.subr.mxu0 0.0
    %687 = vmatpush1.msra.mxu0 0.0
    %688 = vmatprep.subr.mxu0 0.0
    %689 = vmatpush1.msra.mxu0 0.0
    %690 = vmatprep.subr.mxu0 0.0
    %691 = vmatpush1.msra.mxu0 0.0
    %692 = vmatprep.mubr.f32.mxu0 0.0
    %693 = vmatmul.mubr.f32.gmra.mrb[0].mxu0 %v626
    %v694 = vpop.f32.mrb[0].mxu0
    %v695 = vadd.f32 0.0, %v694
    %v696 = vpop.f32.mrb[0].mxu0
    %697 = vdwg.mxu0
    %v699 = vrot.slane %v695, 2
    %v701 = vadd.f32 %v259, %v699
    %v702 = vxor.u32 %v701, 2147483648
    %v703 = vmul.f32 %v702, 1.442695
    %v704 = vpow.pop %v703
    %v705 = vadd.f32 %v704, 1.0
    %v706 = vrcp.pop %v705
    %v707 = vmul.f32 1.0, %v706
    %v708 = vtanh.pop %v701
    %v709 = vrot.slane %v601, 6
    %v711 = vmul.f32 %v707, %v709
    %713 = vrot.lane.b32.xlu0 %v708, 64
    %v714 = vpop.permute.xlu0 %713
    %v716 = vmul.f32 %v707, %v714
    %718 = vrot.lane.b32.xlu0 %v716, 32
    %v719 = vpop.permute.xlu0 %718
    %v721 = vadd.f32 %v711, %v719
    %v722 = vtanh.pop %v721
    %724 = vrot.lane.b32.xlu0 %v722, 64
    %v725 = vpop.permute.xlu0 %724
    %v727 = vmul.f32 %v707, %v725
    %729 = vrot.lane.b32.xlu0 %v727, 32
    %v730 = vpop.permute.xlu0 %729
    %s732 = scalar_lea.vmem [#allocation2], 6
    %vm733 = vcmask 261126
    %734 = vst.msk [vmem:[%s732 - $0x6] sm:$0xc0] %vm733, %v730
    %s735 = scalar_lea.vmem [#allocation10], 16
    %736 = vst.msk [vmem:[%s735 - $0x6] sm:$0xc0] %vm733, %v730
    %738 = vrot.lane.b32.xlu0 %v721, 96
    %v739 = vpop.permute.xlu0 %738
    %s741 = scalar_lea.vmem [#allocation10], 18
    %742 = vst.msk [vmem:[%s741 - $0x6] sm:$0xc0] %vm733, %v739
    %v743 = vrot.slane %v727, 6
    %744 = vrot.lane.b32.xlu0 %v743, 32
    %v745 = vpop.permute.xlu0 %744
    %v746 = vsel %vm185, %v745, 0
    %748 = vmatprep.subr.mxu0 0.0
    %749 = vmatpush1.msra.mxu0 %v267
    %750 = vmatprep.subr.mxu0 0.0
    %751 = vmatpush1.msra.mxu0 %v268
    %752 = vmatprep.subr.mxu0 0.0
    %753 = vmatpush1.msra.mxu0 %v269
    %754 = vmatprep.subr.mxu0 0.0
    %755 = vmatpush1.msra.mxu0 %v270
    %756 = vmatprep.subr.mxu0 0.0
    %757 = vmatpush1.msra.mxu0 0.0
    %758 = vmatprep.subr.mxu0 0.0
    %759 = vmatpush1.msra.mxu0 0.0
    %760 = vmatprep.subr.mxu0 0.0
    %761 = vmatpush1.msra.mxu0 0.0
    %762 = vmatprep.subr.mxu0 0.0
    %763 = vmatpush1.msra.mxu0 0.0
    %764 = vmatprep.subr.mxu0 0.0
    %765 = vmatpush1.msra.mxu0 0.0
    %766 = vmatprep.subr.mxu0 0.0
    %767 = vmatpush1.msra.mxu0 0.0
    %768 = vmatprep.subr.mxu0 0.0
    %769 = vmatpush1.msra.mxu0 0.0
    %770 = vmatprep.subr.mxu0 0.0
    %771 = vmatpush1.msra.mxu0 0.0
    %772 = vmatprep.subr.mxu0 0.0
    %773 = vmatpush1.msra.mxu0 0.0
    %774 = vmatprep.subr.mxu0 0.0
    %775 = vmatpush1.msra.mxu0 0.0
    %776 = vmatprep.subr.mxu0 0.0
    %777 = vmatpush1.msra.mxu0 0.0
    %778 = vmatprep.subr.mxu0 0.0
    %779 = vmatpush1.msra.mxu0 0.0
    %780 = vmatprep.subr.mxu0 0.0
    %781 = vmatpush1.msra.mxu0 0.0
    %782 = vmatprep.subr.mxu0 0.0
    %783 = vmatpush1.msra.mxu0 0.0
    %784 = vmatprep.subr.mxu0 0.0
    %785 = vmatpush1.msra.mxu0 0.0
    %786 = vmatprep.subr.mxu0 0.0
    %787 = vmatpush1.msra.mxu0 0.0
    %788 = vmatprep.subr.mxu0 0.0
    %789 = vmatpush1.msra.mxu0 0.0
    %790 = vmatprep.subr.mxu0 0.0
    %791 = vmatpush1.msra.mxu0 0.0
    %792 = vmatprep.subr.mxu0 0.0
    %793 = vmatpush1.msra.mxu0 0.0
    %794 = vmatprep.subr.mxu0 0.0
    %795 = vmatpush1.msra.mxu0 0.0
    %796 = vmatprep.subr.mxu0 0.0
    %797 = vmatpush1.msra.mxu0 0.0
    %798 = vmatprep.subr.mxu0 0.0
    %799 = vmatpush1.msra.mxu0 0.0
    %800 = vmatprep.subr.mxu0 0.0
    %801 = vmatpush1.msra.mxu0 0.0
    %802 = vmatprep.subr.mxu0 0.0
    %803 = vmatpush1.msra.mxu0 0.0
    %804 = vmatprep.subr.mxu0 0.0
    %805 = vmatpush1.msra.mxu0 0.0
    %806 = vmatprep.subr.mxu0 0.0
    %807 = vmatpush1.msra.mxu0 0.0
    %808 = vmatprep.subr.mxu0 0.0
    %809 = vmatpush1.msra.mxu0 0.0
    %810 = vmatprep.subr.mxu0 0.0
    %811 = vmatpush1.msra.mxu0 0.0
    %812 = vmatprep.mubr.f32.mxu0 0.0
    %813 = vmatmul.mubr.f32.gmra.mrb[0].mxu0 %v746
    %v814 = vpop.f32.mrb[0].mxu0
    %v815 = vadd.f32 0.0, %v814
    %v816 = vpop.f32.mrb[0].mxu0
    %817 = vdwg.mxu0
    %v818 = vadd.f32 %v264, %v815
    %v819 = vxor.u32 %v818, 2147483648
    %v820 = vmul.f32 %v819, 1.442695
    %v821 = vpow.pop %v820
    %v822 = vadd.f32 %v821, 1.0
    %v823 = vrcp.pop %v822
    %v824 = vmul.f32 1.0, %v823
    %v825 = vtanh.pop %v818
    %v826 = vrot.slane %v721, 6
    %v828 = vmul.f32 %v824, %v826
    %830 = vrot.lane.b32.xlu0 %v825, 64
    %v831 = vpop.permute.xlu0 %830
    %v833 = vmul.f32 %v824, %v831
    %835 = vrot.lane.b32.xlu0 %v833, 32
    %v836 = vpop.permute.xlu0 %835
    %v838 = vadd.f32 %v828, %v836
    %v839 = vtanh.pop %v838
    %841 = vrot.lane.b32.xlu0 %v839, 64
    %v842 = vpop.permute.xlu0 %841
    %v844 = vmul.f32 %v824, %v842
    %846 = vrot.lane.b32.xlu0 %v844, 32
    %v847 = vpop.permute.xlu0 %846
    %s849 = scalar_lea.vmem [#allocation2], 8
    %850 = vst.msk [vmem:[%s849] sm:$0x3] %vm271, %v847
    %s851 = scalar_lea.vmem [#allocation10], 20
    %852 = vst.msk [vmem:[%s851] sm:$0x3] %vm271, %v847
    %854 = vrot.lane.b32.xlu0 %v838, 96
    %v855 = vpop.permute.xlu0 %854
    %s857 = scalar_lea.vmem [#allocation10], 22
    %858 = vst.msk [vmem:[%s857] sm:$0x3] %vm271, %v855
    %v859 = vsel %vm185, %v847, 0
    %861 = vmatprep.subr.mxu0 0.0
    %862 = vmatpush1.msra.mxu0 %v267
    %863 = vmatprep.subr.mxu0 0.0
    %864 = vmatpush1.msra.mxu0 %v268
    %865 = vmatprep.subr.mxu0 0.0
    %866 = vmatpush1.msra.mxu0 %v269
    %867 = vmatprep.subr.mxu0 0.0
    %868 = vmatpush1.msra.mxu0 %v270
    %869 = vmatprep.subr.mxu0 0.0
    %870 = vmatpush1.msra.mxu0 0.0
    %871 = vmatprep.subr.mxu0 0.0
    %872 = vmatpush1.msra.mxu0 0.0
    %873 = vmatprep.subr.mxu0 0.0
    %874 = vmatpush1.msra.mxu0 0.0
    %875 = vmatprep.subr.mxu0 0.0
    %876 = vmatpush1.msra.mxu0 0.0
    %877 = vmatprep.subr.mxu0 0.0
    %878 = vmatpush1.msra.mxu0 0.0
    %879 = vmatprep.subr.mxu0 0.0
    %880 = vmatpush1.msra.mxu0 0.0
    %881 = vmatprep.subr.mxu0 0.0
    %882 = vmatpush1.msra.mxu0 0.0
    %883 = vmatprep.subr.mxu0 0.0
    %884 = vmatpush1.msra.mxu0 0.0
    %885 = vmatprep.subr.mxu0 0.0
    %886 = vmatpush1.msra.mxu0 0.0
    %887 = vmatprep.subr.mxu0 0.0
    %888 = vmatpush1.msra.mxu0 0.0
    %889 = vmatprep.subr.mxu0 0.0
    %890 = vmatpush1.msra.mxu0 0.0
    %891 = vmatprep.subr.mxu0 0.0
    %892 = vmatpush1.msra.mxu0 0.0
    %893 = vmatprep.subr.mxu0 0.0
    %894 = vmatpush1.msra.mxu0 0.0
    %895 = vmatprep.subr.mxu0 0.0
    %896 = vmatpush1.msra.mxu0 0.0
    %897 = vmatprep.subr.mxu0 0.0
    %898 = vmatpush1.msra.mxu0 0.0
    %899 = vmatprep.subr.mxu0 0.0
    %900 = vmatpush1.msra.mxu0 0.0
    %901 = vmatprep.subr.mxu0 0.0
    %902 = vmatpush1.msra.mxu0 0.0
    %903 = vmatprep.subr.mxu0 0.0
    %904 = vmatpush1.msra.mxu0 0.0
    %905 = vmatprep.subr.mxu0 0.0
    %906 = vmatpush1.msra.mxu0 0.0
    %907 = vmatprep.subr.mxu0 0.0
    %908 = vmatpush1.msra.mxu0 0.0
    %909 = vmatprep.subr.mxu0 0.0
    %910 = vmatpush1.msra.mxu0 0.0
    %911 = vmatprep.subr.mxu0 0.0
    %912 = vmatpush1.msra.mxu0 0.0
    %913 = vmatprep.subr.mxu0 0.0
    %914 = vmatpush1.msra.mxu0 0.0
    %915 = vmatprep.subr.mxu0 0.0
    %916 = vmatpush1.msra.mxu0 0.0
    %917 = vmatprep.subr.mxu0 0.0
    %918 = vmatpush1.msra.mxu0 0.0
    %919 = vmatprep.subr.mxu0 0.0
    %920 = vmatpush1.msra.mxu0 0.0
    %921 = vmatprep.subr.mxu0 0.0
    %922 = vmatpush1.msra.mxu0 0.0
    %923 = vmatprep.subr.mxu0 0.0
    %924 = vmatpush1.msra.mxu0 0.0
    %925 = vmatprep.mubr.f32.mxu0 0.0
    %926 = vmatmul.mubr.f32.gmra.mrb[0].mxu0 %v859
    %v927 = vpop.f32.mrb[0].mxu0
    %v928 = vadd.f32 0.0, %v927
    %v929 = vpop.f32.mrb[0].mxu0
    %930 = vdwg.mxu0
    %v932 = vrot.slane %v928, 6
    %v934 = vadd.f32 %v264, %v932
    %v935 = vxor.u32 %v934, 2147483648
    %v936 = vmul.f32 %v935, 1.442695
    %v937 = vpow.pop %v936
    %v938 = vadd.f32 %v937, 1.0
    %v939 = vrcp.pop %v938
    %v940 = vmul.f32 1.0, %v939
    %v941 = vtanh.pop %v934
    %v942 = vrot.slane %v838, 6
    %v944 = vmul.f32 %v940, %v942
    %946 = vrot.lane.b32.xlu0 %v941, 64
    %v947 = vpop.permute.xlu0 %946
    %v949 = vmul.f32 %v940, %v947
    %951 = vrot.lane.b32.xlu0 %v949, 32
    %v952 = vpop.permute.xlu0 %951
    %v954 = vadd.f32 %v944, %v952
    %v955 = vtanh.pop %v954
    %957 = vrot.lane.b32.xlu0 %v955, 64
    %v958 = vpop.permute.xlu0 %957
    %v960 = vmul.f32 %v940, %v958
    %962 = vrot.lane.b32.xlu0 %v960, 32
    %v963 = vpop.permute.xlu0 %962
    %s965 = scalar_lea.vmem [#allocation2], 10
    %966 = vst.msk [vmem:[%s965 - $0x2] sm:$0xc] %vm493, %v963
    %s967 = scalar_lea.vmem [#allocation10], 24
    %968 = vst.msk [vmem:[%s967 - $0x2] sm:$0xc] %vm493, %v963
    %970 = vrot.lane.b32.xlu0 %v954, 96
    %v971 = vpop.permute.xlu0 %970
    %s973 = scalar_lea.vmem [#allocation10], 26
    %974 = vst.msk [vmem:[%s973 - $0x2] sm:$0xc] %vm493, %v971
    %v975 = vrot.slane %v960, 2
    %976 = vrot.lane.b32.xlu0 %v975, 32
    %v977 = vpop.permute.xlu0 %976
    %v978 = vsel %vm185, %v977, 0
    %980 = vmatprep.subr.mxu0 0.0
    %981 = vmatpush1.msra.mxu0 %v267
    %982 = vmatprep.subr.mxu0 0.0
    %983 = vmatpush1.msra.mxu0 %v268
    %984 = vmatprep.subr.mxu0 0.0
    %985 = vmatpush1.msra.mxu0 %v269
    %986 = vmatprep.subr.mxu0 0.0
    %987 = vmatpush1.msra.mxu0 %v270
    %988 = vmatprep.subr.mxu0 0.0
    %989 = vmatpush1.msra.mxu0 0.0
    %990 = vmatprep.subr.mxu0 0.0
    %991 = vmatpush1.msra.mxu0 0.0
    %992 = vmatprep.subr.mxu0 0.0
    %993 = vmatpush1.msra.mxu0 0.0
    %994 = vmatprep.subr.mxu0 0.0
    %995 = vmatpush1.msra.mxu0 0.0
    %996 = vmatprep.subr.mxu0 0.0
    %997 = vmatpush1.msra.mxu0 0.0
    %998 = vmatprep.subr.mxu0 0.0
    %999 = vmatpush1.msra.mxu0 0.0
    %1000 = vmatprep.subr.mxu0 0.0
    %1001 = vmatpush1.msra.mxu0 0.0
    %1002 = vmatprep.subr.mxu0 0.0
    %1003 = vmatpush1.msra.mxu0 0.0
    %1004 = vmatprep.subr.mxu0 0.0
    %1005 = vmatpush1.msra.mxu0 0.0
    %1006 = vmatprep.subr.mxu0 0.0
    %1007 = vmatpush1.msra.mxu0 0.0
    %1008 = vmatprep.subr.mxu0 0.0
    %1009 = vmatpush1.msra.mxu0 0.0
    %1010 = vmatprep.subr.mxu0 0.0
    %1011 = vmatpush1.msra.mxu0 0.0
    %1012 = vmatprep.subr.mxu0 0.0
    %1013 = vmatpush1.msra.mxu0 0.0
    %1014 = vmatprep.subr.mxu0 0.0
    %1015 = vmatpush1.msra.mxu0 0.0
    %1016 = vmatprep.subr.mxu0 0.0
    %1017 = vmatpush1.msra.mxu0 0.0
    %1018 = vmatprep.subr.mxu0 0.0
    %1019 = vmatpush1.msra.mxu0 0.0
    %1020 = vmatprep.subr.mxu0 0.0
    %1021 = vmatpush1.msra.mxu0 0.0
    %1022 = vmatprep.subr.mxu0 0.0
    %1023 = vmatpush1.msra.mxu0 0.0
    %1024 = vmatprep.subr.mxu0 0.0
    %1025 = vmatpush1.msra.mxu0 0.0
    %1026 = vmatprep.subr.mxu0 0.0
    %1027 = vmatpush1.msra.mxu0 0.0
    %1028 = vmatprep.subr.mxu0 0.0
    %1029 = vmatpush1.msra.mxu0 0.0
    %1030 = vmatprep.subr.mxu0 0.0
    %1031 = vmatpush1.msra.mxu0 0.0
    %1032 = vmatprep.subr.mxu0 0.0
    %1033 = vmatpush1.msra.mxu0 0.0
    %1034 = vmatprep.subr.mxu0 0.0
    %1035 = vmatpush1.msra.mxu0 0.0
    %1036 = vmatprep.subr.mxu0 0.0
    %1037 = vmatpush1.msra.mxu0 0.0
    %1038 = vmatprep.subr.mxu0 0.0
    %1039 = vmatpush1.msra.mxu0 0.0
    %1040 = vmatprep.subr.mxu0 0.0
    %1041 = vmatpush1.msra.mxu0 0.0
    %1042 = vmatprep.subr.mxu0 0.0
    %1043 = vmatpush1.msra.mxu0 0.0
    %1044 = vmatprep.mubr.f32.mxu0 0.0
    %1045 = vmatmul.mubr.f32.gmra.mrb[0].mxu0 %v978
    %v1046 = vpop.f32.mrb[0].mxu0
    %v1047 = vadd.f32 0.0, %v1046
    %v1048 = vpop.f32.mrb[0].mxu0
    %1049 = vdwg.mxu0
    %v1051 = vrot.slane %v1047, 4
    %v1053 = vadd.f32 %v264, %v1051
    %v1054 = vxor.u32 %v1053, 2147483648
    %v1055 = vmul.f32 %v1054, 1.442695
    %v1056 = vpow.pop %v1055
    %v1057 = vadd.f32 %v1056, 1.0
    %v1058 = vrcp.pop %v1057
    %v1059 = vmul.f32 1.0, %v1058
    %v1060 = vtanh.pop %v1053
    %v1061 = vrot.slane %v954, 6
    %v1063 = vmul.f32 %v1059, %v1061
    %1065 = vrot.lane.b32.xlu0 %v1060, 64
    %v1066 = vpop.permute.xlu0 %1065
    %v1068 = vmul.f32 %v1059, %v1066
    %1070 = vrot.lane.b32.xlu0 %v1068, 32
    %v1071 = vpop.permute.xlu0 %1070
    %v1073 = vadd.f32 %v1063, %v1071
    %v1074 = vtanh.pop %v1073
    %1076 = vrot.lane.b32.xlu0 %v1074, 64
    %v1077 = vpop.permute.xlu0 %1076
    %v1079 = vmul.f32 %v1059, %v1077
    %1081 = vrot.lane.b32.xlu0 %v1079, 32
    %v1082 = vpop.permute.xlu0 %1081
    %s1084 = scalar_lea.vmem [#allocation2], 12
    %1085 = vst.msk [vmem:[%s1084 - $0x4] sm:$0x30] %vm613, %v1082
    %s1086 = scalar_lea.vmem [#allocation10], 28
    %1087 = vst.msk [vmem:[%s1086 - $0x4] sm:$0x30] %vm613, %v1082
    %1089 = vrot.lane.b32.xlu0 %v1073, 96
    %v1090 = vpop.permute.xlu0 %1089
    %s1092 = scalar_lea.vmem [#allocation10], 30
    %1093 = vst.msk [vmem:[%s1092 - $0x4] sm:$0x30] %vm613, %v1090
    %v1094 = vrot.slane %v1079, 4
    %1095 = vrot.lane.b32.xlu0 %v1094, 32
    %v1096 = vpop.permute.xlu0 %1095
    %v1097 = vsel %vm185, %v1096, 0
    %1099 = vmatprep.subr.mxu0 0.0
    %1100 = vmatpush1.msra.mxu0 %v267
    %1101 = vmatprep.subr.mxu0 0.0
    %1102 = vmatpush1.msra.mxu0 %v268
    %1103 = vmatprep.subr.mxu0 0.0
    %1104 = vmatpush1.msra.mxu0 %v269
    %1105 = vmatprep.subr.mxu0 0.0
    %1106 = vmatpush1.msra.mxu0 %v270
    %1107 = vmatprep.subr.mxu0 0.0
    %1108 = vmatpush1.msra.mxu0 0.0
    %1109 = vmatprep.subr.mxu0 0.0
    %1110 = vmatpush1.msra.mxu0 0.0
    %1111 = vmatprep.subr.mxu0 0.0
    %1112 = vmatpush1.msra.mxu0 0.0
    %1113 = vmatprep.subr.mxu0 0.0
    %1114 = vmatpush1.msra.mxu0 0.0
    %1115 = vmatprep.subr.mxu0 0.0
    %1116 = vmatpush1.msra.mxu0 0.0
    %1117 = vmatprep.subr.mxu0 0.0
    %1118 = vmatpush1.msra.mxu0 0.0
    %1119 = vmatprep.subr.mxu0 0.0
    %1120 = vmatpush1.msra.mxu0 0.0
    %1121 = vmatprep.subr.mxu0 0.0
    %1122 = vmatpush1.msra.mxu0 0.0
    %1123 = vmatprep.subr.mxu0 0.0
    %1124 = vmatpush1.msra.mxu0 0.0
    %1125 = vmatprep.subr.mxu0 0.0
    %1126 = vmatpush1.msra.mxu0 0.0
    %1127 = vmatprep.subr.mxu0 0.0
    %1128 = vmatpush1.msra.mxu0 0.0
    %1129 = vmatprep.subr.mxu0 0.0
    %1130 = vmatpush1.msra.mxu0 0.0
    %1131 = vmatprep.subr.mxu0 0.0
    %1132 = vmatpush1.msra.mxu0 0.0
    %1133 = vmatprep.subr.mxu0 0.0
    %1134 = vmatpush1.msra.mxu0 0.0
    %1135 = vmatprep.subr.mxu0 0.0
    %1136 = vmatpush1.msra.mxu0 0.0
    %1137 = vmatprep.subr.mxu0 0.0
    %1138 = vmatpush1.msra.mxu0 0.0
    %1139 = vmatprep.subr.mxu0 0.0
    %1140 = vmatpush1.msra.mxu0 0.0
    %1141 = vmatprep.subr.mxu0 0.0
    %1142 = vmatpush1.msra.mxu0 0.0
    %1143 = vmatprep.subr.mxu0 0.0
    %1144 = vmatpush1.msra.mxu0 0.0
    %1145 = vmatprep.subr.mxu0 0.0
    %1146 = vmatpush1.msra.mxu0 0.0
    %1147 = vmatprep.subr.mxu0 0.0
    %1148 = vmatpush1.msra.mxu0 0.0
    %1149 = vmatprep.subr.mxu0 0.0
    %1150 = vmatpush1.msra.mxu0 0.0
    %1151 = vmatprep.subr.mxu0 0.0
    %1152 = vmatpush1.msra.mxu0 0.0
    %1153 = vmatprep.subr.mxu0 0.0
    %1154 = vmatpush1.msra.mxu0 0.0
    %1155 = vmatprep.subr.mxu0 0.0
    %1156 = vmatpush1.msra.mxu0 0.0
    %1157 = vmatprep.subr.mxu0 0.0
    %1158 = vmatpush1.msra.mxu0 0.0
    %1159 = vmatprep.subr.mxu0 0.0
    %1160 = vmatpush1.msra.mxu0 0.0
    %1161 = vmatprep.subr.mxu0 0.0
    %1162 = vmatpush1.msra.mxu0 0.0
    %1163 = vmatprep.mubr.f32.mxu0 0.0
    %1164 = vmatmul.mubr.f32.gmra.mrb[0].mxu0 %v1097
    %v1165 = vpop.f32.mrb[0].mxu0
    %v1166 = vadd.f32 0.0, %v1165
    %v1167 = vpop.f32.mrb[0].mxu0
    %1168 = vdwg.mxu0
    %v1170 = vrot.slane %v1166, 2
    %v1172 = vadd.f32 %v264, %v1170
    %v1173 = vxor.u32 %v1172, 2147483648
    %v1174 = vmul.f32 %v1173, 1.442695
    %v1175 = vpow.pop %v1174
    %v1176 = vadd.f32 %v1175, 1.0
    %v1177 = vrcp.pop %v1176
    %v1178 = vmul.f32 1.0, %v1177
    %v1179 = vtanh.pop %v1172
    %v1180 = vrot.slane %v1073, 6
    %v1182 = vmul.f32 %v1178, %v1180
    %1184 = vrot.lane.b32.xlu0 %v1179, 64
    %v1185 = vpop.permute.xlu0 %1184
    %v1187 = vmul.f32 %v1178, %v1185
    %1189 = vrot.lane.b32.xlu0 %v1187, 32
    %v1190 = vpop.permute.xlu0 %1189
    %v1192 = vadd.f32 %v1182, %v1190
    %v1193 = vtanh.pop %v1192
    %1195 = vrot.lane.b32.xlu0 %v1193, 64
    %v1196 = vpop.permute.xlu0 %1195
    %v1198 = vmul.f32 %v1178, %v1196
    %1200 = vrot.lane.b32.xlu0 %v1198, 32
    %v1201 = vpop.permute.xlu0 %1200
    %s1203 = scalar_lea.vmem [#allocation2], 14
    %1204 = vst.msk [vmem:[%s1203 - $0x6] sm:$0xc0] %vm733, %v1201
    %v1205 = vld [vmem:[#allocation2] sm:$0x3]
    %v1206 = vld [vmem:[#allocation2 + $0x2] sm:$0x3]
    %v1207 = vld [vmem:[#allocation2 + $0x4] sm:$0x3]
    %v1208 = vld [vmem:[#allocation2 + $0x6] sm:$0x3]
    %v1209 = vld [vmem:[#allocation2 + $0x8] sm:$0x3]
    %v1210 = vld [vmem:[#allocation2 + $0xa] sm:$0x3]
    %v1211 = vld [vmem:[#allocation2 + $0xc] sm:$0x3]
    %v1212 = vld [vmem:[#allocation2 + $0xe] sm:$0x3]
    %vm1213 = vcmp.gt.f32.partialorder %v1205, 0.0
    %vm1214 = vcmp.gt.f32.partialorder %v1206, 0.0
    %vm1215 = vcmp.gt.f32.partialorder %v1207, 0.0
    %vm1216 = vcmp.gt.f32.partialorder %v1208, 0.0
    %vm1217 = vcmp.gt.f32.partialorder %v1209, 0.0
    %vm1218 = vcmp.gt.f32.partialorder %v1210, 0.0
    %vm1219 = vcmp.gt.f32.partialorder %v1211, 0.0
    %vm1220 = vcmp.gt.f32.partialorder %v1212, 0.0
    %v1221 = vmul.f32 %v1205, 0.01
    %v1222 = vmul.f32 %v1206, 0.01
    %v1223 = vmul.f32 %v1207, 0.01
    %v1224 = vmul.f32 %v1208, 0.01
    %v1225 = vmul.f32 %v1209, 0.01
    %v1226 = vmul.f32 %v1210, 0.01
    %v1227 = vmul.f32 %v1211, 0.01
    %v1228 = vmul.f32 %v1212, 0.01
    %v1229 = vsel %vm1213, %v1205, %v1221
    %v1230 = vsel %vm1214, %v1206, %v1222
    %v1231 = vsel %vm1215, %v1207, %v1223
    %v1232 = vsel %vm1216, %v1208, %v1224
    %v1233 = vsel %vm1217, %v1209, %v1225
    %v1234 = vsel %vm1218, %v1210, %v1226
    %v1235 = vsel %vm1219, %v1211, %v1227
    %v1236 = vsel %vm1220, %v1212, %v1228
    %v1237 = vld [vmem:[%s6] sm:$0x1]
    %v1239 = vlaneseq
    %v1240 = vshrl.u32 %v1239, 7
    %v1241 = vsub.s32 0, %v1240
    %v1242 = vrot.slane %v1237, %v1241
    %v1244 = vmul.f32 %v1229, %v1242
    %v1245 = vmul.f32 %v1230, %v1242
    %v1246 = vmul.f32 %v1231, %v1242
    %v1247 = vmul.f32 %v1232, %v1242
    %v1248 = vmul.f32 %v1233, %v1242
    %v1249 = vmul.f32 %v1234, %v1242
    %v1250 = vmul.f32 %v1235, %v1242
    %v1251 = vmul.f32 %v1236, %v1242
    %v1252 = vsel %vm271, %v1244, 0.0
    %1253 = vadd.xlane.f32.xlu0 %v1252
    %v1254 = vpop.xlane.xlu0 %1253
    %v1255 = vsel %vm271, %v1245, 0.0
    %1256 = vadd.xlane.f32.xlu0 %v1255
    %v1257 = vpop.xlane.xlu0 %1256
    %v1258 = vsel %vm271, %v1246, 0.0
    %1259 = vadd.xlane.f32.xlu0 %v1258
    %v1260 = vpop.xlane.xlu0 %1259
    %v1261 = vsel %vm271, %v1247, 0.0
    %1262 = vadd.xlane.f32.xlu0 %v1261
    %v1263 = vpop.xlane.xlu0 %1262
    %v1264 = vsel %vm271, %v1248, 0.0
    %1265 = vadd.xlane.f32.xlu0 %v1264
    %v1266 = vpop.xlane.xlu0 %1265
    %v1267 = vsel %vm271, %v1249, 0.0
    %1268 = vadd.xlane.f32.xlu0 %v1267
    %v1269 = vpop.xlane.xlu0 %1268
    %v1270 = vsel %vm271, %v1250, 0.0
    %1271 = vadd.xlane.f32.xlu0 %v1270
    %v1272 = vpop.xlane.xlu0 %1271
    %v1273 = vsel %vm271, %v1251, 0.0
    %1274 = vadd.xlane.f32.xlu0 %v1273
    %v1275 = vpop.xlane.xlu0 %1274
    %v1276 = vld [vmem:[#allocation3] sm:$0x1]
    %v1278 = vlaneseq
    %v1279 = vshrl.u32 %v1278, 7
    %v1280 = vsub.s32 0, %v1279
    %v1281 = vrot.slane %v1276, %v1280
    %1282 = vset.pattern.permute.xlu0 0
    %1283 = vperm.xlu0 %1282, %v1281
    %v1284 = vpop.permute.xlu0 %1283
    %v1286 = vadd.f32 %v1254, %v1284
    %v1287 = vadd.f32 %v1257, %v1284
    %v1288 = vadd.f32 %v1260, %v1284
    %v1289 = vadd.f32 %v1263, %v1284
    %v1290 = vadd.f32 %v1266, %v1284
    %v1291 = vadd.f32 %v1269, %v1284
    %v1292 = vadd.f32 %v1272, %v1284
    %v1293 = vadd.f32 %v1275, %v1284
    %v1302 = vlaneseq
    %v1303 = vand.u32 %v1302, 127
    %v1304 = vlaneseq
    %v1305 = vshrl.u32 %v1304, 7
    %v1306 = vsub.s32 %v1303, %v1305
    %v1307 = vrot.slane %v1286, %v1306
    %v1308 = vlaneseq
    %v1309 = vshrl.u32 %v1308, 7
    %v1310 = vsub.s32 %v1303, %v1309
    %v1311 = vrot.slane %v1287, %v1310
    %v1312 = vlaneseq
    %v1313 = vshrl.u32 %v1312, 7
    %v1314 = vsub.s32 %v1303, %v1313
    %v1315 = vrot.slane %v1288, %v1314
    %v1316 = vlaneseq
    %v1317 = vshrl.u32 %v1316, 7
    %v1318 = vsub.s32 %v1303, %v1317
    %v1319 = vrot.slane %v1289, %v1318
    %v1320 = vlaneseq
    %v1321 = vshrl.u32 %v1320, 7
    %v1322 = vsub.s32 %v1303, %v1321
    %v1323 = vrot.slane %v1290, %v1322
    %v1324 = vlaneseq
    %v1325 = vshrl.u32 %v1324, 7
    %v1326 = vsub.s32 %v1303, %v1325
    %v1327 = vrot.slane %v1291, %v1326
    %v1328 = vlaneseq
    %v1329 = vshrl.u32 %v1328, 7
    %v1330 = vsub.s32 %v1303, %v1329
    %v1331 = vrot.slane %v1292, %v1330
    %v1332 = vlaneseq
    %v1333 = vshrl.u32 %v1332, 7
    %v1334 = vsub.s32 %v1303, %v1333
    %v1335 = vrot.slane %v1293, %v1334
    %vm1336 = vcmask 1041409
    %v1337 = vsel %vm1336, %v1311, %v1307
    %vm1338 = vcmask 1042434
    %v1339 = vsel %vm1338, %v1315, %v1337
    %vm1340 = vcmask 1043459
    %v1341 = vsel %vm1340, %v1319, %v1339
    %vm1342 = vcmask 1044484
    %v1343 = vsel %vm1342, %v1323, %v1341
    %vm1344 = vcmask 1045509
    %v1345 = vsel %vm1344, %v1327, %v1343
    %vm1346 = vcmask 1046534
    %v1347 = vsel %vm1346, %v1331, %v1345
    %vm1348 = vcmask 1047559
    %v1349 = vsel %vm1348, %v1335, %v1347
    %vm1351 = vcmask 15360
    %1352 = vst.msk [vmem:[%s8] sm:$0xff] %vm1351, %v1349
    // Predicated region
    $region46: #{value_network_lstm_forward.1} parent=1 // pred_check
      _
    $region47: #{value_network_lstm_forward.1} parent=1 // pred_check_branch
      %1354 = sbr.rel (0) target = $region49
    $region48: #{value_network_lstm_forward.1} parent=1 // pred_region
      _
    $region49: #{value_network_lstm_forward.1} parent=1 // pred_fallthru
      _
    // Predicated region
    $region50: #{value_network_lstm_forward.1} parent=1 // pred_check
      _
    $region51: #{value_network_lstm_forward.1} parent=1 // pred_check_branch
      %1356 = sbr.rel (0) target = $region53
    $region52: #{value_network_lstm_forward.1} parent=1 // pred_region
      %s1358 = ssub.s32 512, 512
      %1359 = vsyncadd [#allocation6], %s1358
      %s1360 = sshll.u32 [#allocation10], 4
      %s1361 = int_to_ptr.vmem [resolvable:$true] %s1360
      %1366 = dma.vmem_to_hbm [thread:$0]  %s1361, 512, %s9, [#allocation6], 32, 32, 2
    $region53: #{value_network_lstm_forward.1} parent=1 // pred_fallthru
      _
    // Predicated region
    $region54: #{value_network_lstm_forward.1} parent=1 // pred_check
      _
    $region55: #{value_network_lstm_forward.1} parent=1 // pred_check_branch
      %1368 = sbr.rel (0) target = $region57
    $region56: #{value_network_lstm_forward.1} parent=1 // pred_region
      _
    $region57: #{value_network_lstm_forward.1} parent=1 // pred_fallthru
      _
    // Predicated region
    $region58: #{value_network_lstm_forward.1} parent=1 // pred_check
      _
    $region59: #{value_network_lstm_forward.1} parent=1 // pred_check_branch
      %1370 = sbr.rel (0) target = $region61
    $region60: #{value_network_lstm_forward.1} parent=1 // pred_region
      %1371 = dma.done [#allocation6], 512
    $region61: #{value_network_lstm_forward.1} parent=1 // pred_fallthru
      _
    %1372 = vsyncpa [#allocation5], 1
    %1373 = vsyncpa [#allocation8], 1
    %1374 = vsyncpa [#allocation6], 1

</llo_original>
